<compile_context>
chip_gen: v7x
topology: tpu7x:2x2x1
jax: 0.10.0
libtpu: 0.0.40
codegen_flags: <defaults>
</compile_context>

<pallas_src>
import math
from functools import partial

import jax
import jax.numpy as jnp
from jax.experimental import pallas as pl
from jax.experimental.pallas import tpu as pltpu


PRED_PAD = 128  # lane-dense padded width for the (B, label_num) prediction


# ---------------------------------------------------------------------------
# Single fused kernel: dt concat + classifier head + two cross attentions
# ---------------------------------------------------------------------------
def _pred_model_kernel(drug_ref, prot_ref,
                       wd_ref, wp_ref, wa_ref, bsm_ref,
                       w2_ref, b2_ref,
                       out_ref,
                       *, num_heads, head_dim, hidden):
    H = hidden
    AH = num_heads * head_dim

    drug = drug_ref[...]
    prot = prot_ref[...]

    # ---- fused drug-side projection: drug @ [Wk1 | Wv1 | W1_top] ------------
    proj_d = jnp.dot(drug, wd_ref[...], preferred_element_type=jnp.float32)
    k1 = proj_d[:, 0:AH]
    v1 = proj_d[:, AH:2 * AH]
    h_d = proj_d[:, 2 * AH:2 * AH + H]

    # ---- fused prot-side projection: prot @ [Wq1*s | Wk2 | Wv2 | W1_bot] ----
    proj_p = jnp.dot(prot, wp_ref[...], preferred_element_type=jnp.float32)
    q1 = proj_p[:, 0:AH]
    k2 = proj_p[:, AH:2 * AH]
    v2 = proj_p[:, 2 * AH:3 * AH]
    h_p = proj_p[:, 3 * AH:3 * AH + H]

    # small biases packed into one (1, 3H) slab
    b1 = bsm_ref[:, 0:H]
    bo1 = bsm_ref[:, H:2 * H]
    bo2 = bsm_ref[:, 2 * H:3 * H]

    # ---- classifier head: pred = relu(dt @ W1 + b1) @ W2_pad + b2_pad -------
    h = jnp.maximum(h_d + h_p + b1, 0.0)
    pred = jnp.dot(h, w2_ref[...], preferred_element_type=jnp.float32) + b2_ref[...]

    # packed attention weights: [Wo1_perm | Wq2*s | Wo2_perm]  (all H==AH rows)
    wo1_perm = wa_ref[:, 0:H]
    wq2_scaled = wa_ref[:, H:H + AH]
    wo2_perm = wa_ref[:, H + AH:H + AH + H]

    # ---- MultiCrossAttention core (q attends over heads of k/v) -------------
    def attn(q, k, v, wo_perm, bo):
        head_out = []
        for hh in range(num_heads):
            qh = q[:, hh * head_dim:(hh + 1) * head_dim]          # (B, hd)
            # per-head scores (B, num_heads): VPU mul + lane reductions
            s = jnp.concatenate(
                [jnp.sum(qh * k[:, g * head_dim:(g + 1) * head_dim],
                         axis=-1, keepdims=True)
                 for g in range(num_heads)], axis=-1)              # (B, nh)
            m = jnp.max(s, axis=-1, keepdims=True)
            e = jnp.exp(s - m)
            inv = pl.reciprocal(jnp.sum(e, axis=-1, keepdims=True), approx=True)
            a = e * inv                                            # (B, nh)
            o_h = a[:, 0:1] * v[:, 0:head_dim]
            for g in range(1, num_heads):
                o_h = o_h + a[:, g:g + 1] * v[:, g * head_dim:(g + 1) * head_dim]
            head_out.append(o_h)
        # head-major lane concat + ONE output matmul against row-permuted Wo
        # (row permutation reproduces torch's transpose(1,2).view layout)
        o_cat = jnp.concatenate(head_out, axis=-1)                 # (B, AH)
        return jnp.dot(o_cat, wo_perm, preferred_element_type=jnp.float32) + bo

    a1 = attn(q1, k1, v1, wo1_perm, bo1)                           # cra_1(prot, drug)
    q2 = jnp.dot(a1, wq2_scaled, preferred_element_type=jnp.float32)
    a2 = attn(q2, k2, v2, wo2_perm, bo2)                           # cra_2(a1, prot)

    # ---- single lane-dense packed store: [dt(2H) | a1(H) | a2(H) | pred(128)]
    packed = jnp.concatenate([drug, prot, a1, a2, pred], axis=-1)
    out_ref[...] = packed.astype(out_ref.dtype)


# ---------------------------------------------------------------------------
# Wrapper: one pallas_call for the whole forward pass
# ---------------------------------------------------------------------------
def pred_model_fused(drug, prot, params, *, num_heads, head_dim, label_num):
    B, H = drug.shape
    AH = num_heads * head_dim
    assert H == AH, "packed-weight layout assumes hidden_size == all_head_size"
    OUT_W = 4 * H + PRED_PAD

    def full2d(shape):
        return pl.BlockSpec(shape, lambda i: (0, 0))

    kernel = partial(_pred_model_kernel, num_heads=num_heads,
                     head_dim=head_dim, hidden=H)
    out = pl.pallas_call(
        kernel,
        out_shape=jax.ShapeDtypeStruct((B, OUT_W), jnp.float32),
        grid=(1,),
        in_specs=[
            full2d((B, H)), full2d((B, H)),
            full2d((H, 3 * H)),       # [Wk1 | Wv1 | W1_top]
            full2d((H, 4 * H)),       # [Wq1*s | Wk2 | Wv2 | W1_bot]
            full2d((H, 3 * H)),       # [Wo1_perm | Wq2*s | Wo2_perm]
            full2d((1, 3 * H)),       # [b1 | bo1 | bo2]
            full2d((H, PRED_PAD)),    # padded cls_2 weight
            full2d((1, PRED_PAD)),    # padded cls_2 bias
        ],
        out_specs=full2d((B, OUT_W)),
        compiler_params=pltpu.CompilerParams(dimension_semantics=("arbitrary",)),
    )(drug, prot,
      params["wd_pack"], params["wp_pack"], params["wa_pack"], params["b_pack"],
      params["cls2_wt_pad"], params["cls2_b_pad"])

    dt = out[:, 0:2 * H]
    a1 = out[:, 2 * H:3 * H]
    a2 = out[:, 3 * H:4 * H]
    pred = out[:, 4 * H:4 * H + label_num]
    # torch returns only (dt, pred); a1/a2 are returned purely so the in-kernel
    # attention path can be verified against a reference.
    return dt, pred, a1, a2


# ---------------------------------------------------------------------------
# Parameter setup (one-time weight preprocessing) + pure-JAX reference
# ---------------------------------------------------------------------------
def permute_output_rows(wo_t, num_heads, head_dim):
    # our concat order i = h*head_dim + d ; torch flat order j = d*num_heads + h
    idx = jnp.array([(i % head_dim) * num_heads + (i // head_dim)
                     for i in range(num_heads * head_dim)], dtype=jnp.int32)
    return wo_t[idx, :]


def init_cross_attn_params(key, hidden, all_head, num_heads):
    head_dim = all_head // num_heads
    ks = jax.random.split(key, 5)
    scale = 0.05
    wq_t = scale * jax.random.normal(ks[0], (hidden, all_head), jnp.float32)
    wk_t = scale * jax.random.normal(ks[1], (hidden, all_head), jnp.float32)
    wv_t = scale * jax.random.normal(ks[2], (hidden, all_head), jnp.float32)
    wo_t = scale * jax.random.normal(ks[3], (all_head, hidden), jnp.float32)
    bo = scale * jax.random.normal(ks[4], (1, hidden), jnp.float32)
    return dict(
        wq_t=wq_t, wk_t=wk_t, wv_t=wv_t, wo_t=wo_t, bo=bo,
        # kernel-side preprocessed weights (constant transforms, done once):
        wq_scaled=wq_t * (1.0 / math.sqrt(head_dim)),
        wo_perm=permute_output_rows(wo_t, num_heads, head_dim),
    )


def cross_attention_ref(x, y, p, num_heads, head_dim):
    B = x.shape[0]
    q = (x @ p["wq_t"]).reshape(B, num_heads, head_dim)
    k = (y @ p["wk_t"]).reshape(B, num_heads, head_dim)
    v = (y @ p["wv_t"]).reshape(B, num_heads, head_dim)
    s = jnp.einsum("bhd,bgd->bhg", q, k) / math.sqrt(head_dim)
    a = jax.nn.softmax(s, axis=-1)
    o = jnp.einsum("bhg,bgd->bhd", a, v)
    o = jnp.transpose(o, (0, 2, 1)).reshape(B, num_heads * head_dim)
    return o @ p["wo_t"] + p["bo"]


# ---------------------------------------------------------------------------
if __name__ == "__main__":
    key = jax.random.PRNGKey(0)
    B = 8
    hidden_size = 32
    all_head_size = 32
    head_num = 4
    head_dim = all_head_size // head_num
    label_num = 2

    k_in, k_c1, k_c2, k_cls = jax.random.split(key, 4)
    kd, kp = jax.random.split(k_in)
    drug_features = jax.random.normal(kd, (B, hidden_size), jnp.float32)
    prot_features = jax.random.normal(kp, (B, hidden_size), jnp.float32)

    cra1 = init_cross_attn_params(k_c1, hidden_size, all_head_size, head_num)
    cra2 = init_cross_attn_params(k_c2, hidden_size, all_head_size, head_num)

    kc1w, kc1b, kc2w, kc2b = jax.random.split(k_cls, 4)
    dt_dim = 2 * hidden_size
    cls1_wt = 0.05 * jax.random.normal(kc1w, (dt_dim, hidden_size), jnp.float32)
    cls1_b = 0.05 * jax.random.normal(kc1b, (1, hidden_size), jnp.float32)
    cls2_wt = 0.05 * jax.random.normal(kc2w, (hidden_size, label_num), jnp.float32)
    cls2_b = 0.05 * jax.random.normal(kc2b, (1, label_num), jnp.float32)
    # lane-dense padded classifier output weights (zeros beyond label_num)
    cls2_wt_pad = jnp.zeros((hidden_size, PRED_PAD), jnp.float32).at[:, :label_num].set(cls2_wt)
    cls2_b_pad = jnp.zeros((1, PRED_PAD), jnp.float32).at[:, :label_num].set(cls2_b)

    # ---- one-time weight packing for the fused kernel ------------------------
    wd_pack = jnp.concatenate(
        [cra1["wk_t"], cra1["wv_t"], cls1_wt[:hidden_size]], axis=1)           # (H, 3H)
    wp_pack = jnp.concatenate(
        [cra1["wq_scaled"], cra2["wk_t"], cra2["wv_t"], cls1_wt[hidden_size:]],
        axis=1)                                                                # (H, 4H)
    wa_pack = jnp.concatenate(
        [cra1["wo_perm"], cra2["wq_scaled"], cra2["wo_perm"]], axis=1)         # (H, 3H)
    b_pack = jnp.concatenate([cls1_b, cra1["bo"], cra2["bo"]], axis=1)         # (1, 3H)

    params = dict(wd_pack=wd_pack, wp_pack=wp_pack, wa_pack=wa_pack,
                  b_pack=b_pack, cls2_wt_pad=cls2_wt_pad, cls2_b_pad=cls2_b_pad)

    fwd = jax.jit(partial(pred_model_fused, num_heads=head_num,
                          head_dim=head_dim, label_num=label_num))
    dt, pred, drug_a, prot_a = fwd(drug_features, prot_features, params)
    jax.block_until_ready((dt, pred, drug_a, prot_a))

    # ---- pure-JAX reference check --------------------------------------------
    dt_ref = jnp.concatenate([drug_features, prot_features], axis=-1)
    drug_a_ref = cross_attention_ref(prot_features, drug_features, cra1,
                                     head_num, head_dim)
    prot_a_ref = cross_attention_ref(drug_a_ref, prot_features, cra2,
                                     head_num, head_dim)
    pred_ref = jnp.maximum(dt_ref @ cls1_wt + cls1_b, 0.0) @ cls2_wt + cls2_b

    assert jnp.allclose(dt, dt_ref, atol=1e-3, rtol=1e-3)
    assert jnp.allclose(pred, pred_ref, atol=1e-3, rtol=1e-3)
    assert jnp.allclose(drug_a, drug_a_ref, atol=2e-3, rtol=2e-3)
    assert jnp.allclose(prot_a, prot_a_ref, atol=2e-3, rtol=2e-3)

    print("KERNEL_OK")
</pallas_src>

<mosaic_0001>
module attributes {stable_mosaic.version = 11 : i64} {
  func.func @_pred_model_kernel(%arg0: i32, %arg1: memref<8x32xf32, #tpu.memory_space<vmem>>, %arg2: memref<8x32xf32, #tpu.memory_space<vmem>>, %arg3: memref<32x96xf32, #tpu.memory_space<vmem>>, %arg4: memref<32x128xf32, #tpu.memory_space<vmem>>, %arg5: memref<32x96xf32, #tpu.memory_space<vmem>>, %arg6: memref<1x96xf32, #tpu.memory_space<vmem>>, %arg7: memref<32x128xf32, #tpu.memory_space<vmem>>, %arg8: memref<1x128xf32, #tpu.memory_space<vmem>>, %arg9: memref<8x256xf32, #tpu.memory_space<vmem>>) attributes {dimension_semantics = [#tpu.dimension_semantics<arbitrary>], iteration_bounds = array<i64: 1>, scalar_prefetch = 0 : i64, scratch_operands = 0 : i64, tpu.core_type = #tpu.core_type<tc>, window_params = [{pipeline_mode = #tpu.pipeline_mode<synchronous>, transform_indices = @transform_0, window_bounds = array<i64: 8, 32>}, {pipeline_mode = #tpu.pipeline_mode<synchronous>, transform_indices = @transform_1, window_bounds = array<i64: 8, 32>}, {pipeline_mode = #tpu.pipeline_mode<synchronous>, transform_indices = @transform_2, window_bounds = array<i64: 32, 96>}, {pipeline_mode = #tpu.pipeline_mode<synchronous>, transform_indices = @transform_3, window_bounds = array<i64: 32, 128>}, {pipeline_mode = #tpu.pipeline_mode<synchronous>, transform_indices = @transform_4, window_bounds = array<i64: 32, 96>}, {pipeline_mode = #tpu.pipeline_mode<synchronous>, transform_indices = @transform_5, window_bounds = array<i64: 1, 96>}, {pipeline_mode = #tpu.pipeline_mode<synchronous>, transform_indices = @transform_6, window_bounds = array<i64: 32, 128>}, {pipeline_mode = #tpu.pipeline_mode<synchronous>, transform_indices = @transform_7, window_bounds = array<i64: 1, 128>}, {pipeline_mode = #tpu.pipeline_mode<synchronous>, transform_indices = @transform_8, window_bounds = array<i64: 8, 256>}]} {
    %c0 = arith.constant 0 : index
    %c0_0 = arith.constant 0 : index
    %0 = vector.load %arg1[%c0, %c0_0] : memref<8x32xf32, #tpu.memory_space<vmem>>, vector<8x32xf32>
    %c0_1 = arith.constant 0 : index
    %c0_2 = arith.constant 0 : index
    %1 = vector.load %arg2[%c0_1, %c0_2] : memref<8x32xf32, #tpu.memory_space<vmem>>, vector<8x32xf32>
    %c0_3 = arith.constant 0 : index
    %c0_4 = arith.constant 0 : index
    %2 = vector.load %arg3[%c0_3, %c0_4] : memref<32x96xf32, #tpu.memory_space<vmem>>, vector<32x96xf32>
    %cst = arith.constant dense<0.000000e+00> : vector<8x96xf32>
    %3 = tpu.matmul %0, %2, %cst {dimension_numbers = #tpu.dot_dimension_numbers<[1], [0], [0], [1], [0, 0, 1, 1], [], []>} : vector<8x32xf32>, vector<32x96xf32>, vector<8x96xf32> -> vector<8x96xf32>
    %4 = vector.extract_strided_slice %3 {offsets = [0, 0], sizes = [8, 32], strides = [1, 1]} : vector<8x96xf32> to vector<8x32xf32>
    %5 = vector.extract_strided_slice %3 {offsets = [0, 32], sizes = [8, 32], strides = [1, 1]} : vector<8x96xf32> to vector<8x32xf32>
    %6 = vector.extract_strided_slice %3 {offsets = [0, 64], sizes = [8, 32], strides = [1, 1]} : vector<8x96xf32> to vector<8x32xf32>
    %c0_5 = arith.constant 0 : index
    %c0_6 = arith.constant 0 : index
    %7 = vector.load %arg4[%c0_5, %c0_6] : memref<32x128xf32, #tpu.memory_space<vmem>>, vector<32x128xf32>
    %cst_7 = arith.constant dense<0.000000e+00> : vector<8x128xf32>
    %8 = tpu.matmul %1, %7, %cst_7 {dimension_numbers = #tpu.dot_dimension_numbers<[1], [0], [0], [1], [0, 0, 1, 1], [], []>} : vector<8x32xf32>, vector<32x128xf32>, vector<8x128xf32> -> vector<8x128xf32>
    %9 = vector.extract_strided_slice %8 {offsets = [0, 0], sizes = [8, 32], strides = [1, 1]} : vector<8x128xf32> to vector<8x32xf32>
    %10 = vector.extract_strided_slice %8 {offsets = [0, 32], sizes = [8, 32], strides = [1, 1]} : vector<8x128xf32> to vector<8x32xf32>
    %11 = vector.extract_strided_slice %8 {offsets = [0, 64], sizes = [8, 32], strides = [1, 1]} : vector<8x128xf32> to vector<8x32xf32>
    %12 = vector.extract_strided_slice %8 {offsets = [0, 96], sizes = [8, 32], strides = [1, 1]} : vector<8x128xf32> to vector<8x32xf32>
    %c0_8 = arith.constant 0 : index
    %c0_9 = arith.constant 0 : index
    %13 = vector.load %arg6[%c0_8, %c0_9] : memref<1x96xf32, #tpu.memory_space<vmem>>, vector<1x32xf32>
    %c0_10 = arith.constant 0 : index
    %c32 = arith.constant 32 : index
    %14 = vector.load %arg6[%c0_10, %c32] : memref<1x96xf32, #tpu.memory_space<vmem>>, vector<1x32xf32>
    %c0_11 = arith.constant 0 : index
    %c64 = arith.constant 64 : index
    %15 = vector.load %arg6[%c0_11, %c64] : memref<1x96xf32, #tpu.memory_space<vmem>>, vector<1x32xf32>
    %16 = arith.addf %6, %12 : vector<8x32xf32>
    %17 = vector.broadcast %13 : vector<1x32xf32> to vector<8x32xf32>
    %18 = arith.addf %16, %17 : vector<8x32xf32>
    %cst_12 = arith.constant 0.000000e+00 : f32
    %19 = vector.broadcast %cst_12 : f32 to vector<8x32xf32>
    %20 = arith.maximumf %18, %19 : vector<8x32xf32>
    %c0_13 = arith.constant 0 : index
    %c0_14 = arith.constant 0 : index
    %21 = vector.load %arg7[%c0_13, %c0_14] : memref<32x128xf32, #tpu.memory_space<vmem>>, vector<32x128xf32>
    %cst_15 = arith.constant dense<0.000000e+00> : vector<8x128xf32>
    %22 = tpu.matmul %20, %21, %cst_15 {dimension_numbers = #tpu.dot_dimension_numbers<[1], [0], [0], [1], [0, 0, 1, 1], [], []>} : vector<8x32xf32>, vector<32x128xf32>, vector<8x128xf32> -> vector<8x128xf32>
    %c0_16 = arith.constant 0 : index
    %c0_17 = arith.constant 0 : index
    %23 = vector.load %arg8[%c0_16, %c0_17] : memref<1x128xf32, #tpu.memory_space<vmem>>, vector<1x128xf32>
    %24 = vector.broadcast %23 : vector<1x128xf32> to vector<8x128xf32>
    %25 = arith.addf %22, %24 : vector<8x128xf32>
    %c0_18 = arith.constant 0 : index
    %c0_19 = arith.constant 0 : index
    %26 = vector.load %arg5[%c0_18, %c0_19] : memref<32x96xf32, #tpu.memory_space<vmem>>, vector<32x32xf32>
    %c0_20 = arith.constant 0 : index
    %c32_21 = arith.constant 32 : index
    %27 = vector.load %arg5[%c0_20, %c32_21] : memref<32x96xf32, #tpu.memory_space<vmem>>, vector<32x32xf32>
    %c0_22 = arith.constant 0 : index
    %c64_23 = arith.constant 64 : index
    %28 = vector.load %arg5[%c0_22, %c64_23] : memref<32x96xf32, #tpu.memory_space<vmem>>, vector<32x32xf32>
    %29 = vector.extract_strided_slice %9 {offsets = [0, 0], sizes = [8, 8], strides = [1, 1]} : vector<8x32xf32> to vector<8x8xf32>
    %30 = vector.extract_strided_slice %4 {offsets = [0, 0], sizes = [8, 8], strides = [1, 1]} : vector<8x32xf32> to vector<8x8xf32>
    %31 = arith.mulf %29, %30 : vector<8x8xf32>
    %cst_24 = arith.constant dense<0.000000e+00> : vector<8xf32>
    %32 = vector.multi_reduction <add>, %31, %cst_24 [1] : vector<8x8xf32> to vector<8xf32>
    %33 = vector.shape_cast %32 : vector<8xf32> to vector<8x1xf32>
    %34 = vector.extract_strided_slice %4 {offsets = [0, 8], sizes = [8, 8], strides = [1, 1]} : vector<8x32xf32> to vector<8x8xf32>
    %35 = arith.mulf %29, %34 : vector<8x8xf32>
    %cst_25 = arith.constant dense<0.000000e+00> : vector<8xf32>
    %36 = vector.multi_reduction <add>, %35, %cst_25 [1] : vector<8x8xf32> to vector<8xf32>
    %37 = vector.shape_cast %36 : vector<8xf32> to vector<8x1xf32>
    %38 = vector.extract_strided_slice %4 {offsets = [0, 16], sizes = [8, 8], strides = [1, 1]} : vector<8x32xf32> to vector<8x8xf32>
    %39 = arith.mulf %29, %38 : vector<8x8xf32>
    %cst_26 = arith.constant dense<0.000000e+00> : vector<8xf32>
    %40 = vector.multi_reduction <add>, %39, %cst_26 [1] : vector<8x8xf32> to vector<8xf32>
    %41 = vector.shape_cast %40 : vector<8xf32> to vector<8x1xf32>
    %42 = vector.extract_strided_slice %4 {offsets = [0, 24], sizes = [8, 8], strides = [1, 1]} : vector<8x32xf32> to vector<8x8xf32>
    %43 = arith.mulf %29, %42 : vector<8x8xf32>
    %cst_27 = arith.constant dense<0.000000e+00> : vector<8xf32>
    %44 = vector.multi_reduction <add>, %43, %cst_27 [1] : vector<8x8xf32> to vector<8xf32>
    %45 = vector.shape_cast %44 : vector<8xf32> to vector<8x1xf32>
    %46 = tpu.concatenate %33, %37, %41, %45 in 1 : vector<8x1xf32>, vector<8x1xf32>, vector<8x1xf32>, vector<8x1xf32> -> vector<8x4xf32>
    %cst_28 = arith.constant dense<0xFF800000> : vector<8xf32>
    %47 = vector.multi_reduction <maximumf>, %46, %cst_28 [1] : vector<8x4xf32> to vector<8xf32>
    %48 = vector.shape_cast %47 : vector<8xf32> to vector<8x1xf32>
    %49 = vector.broadcast %48 : vector<8x1xf32> to vector<8x4xf32>
    %50 = arith.subf %46, %49 : vector<8x4xf32>
    %51 = math.exp %50 : vector<8x4xf32>
    %cst_29 = arith.constant dense<0.000000e+00> : vector<8xf32>
    %52 = vector.multi_reduction <add>, %51, %cst_29 [1] : vector<8x4xf32> to vector<8xf32>
    %53 = vector.shape_cast %52 : vector<8xf32> to vector<8x1xf32>
    %54 = tpu.reciprocal %53 {approx = true} : vector<8x1xf32> -> vector<8x1xf32>
    %55 = vector.broadcast %54 : vector<8x1xf32> to vector<8x4xf32>
    %56 = arith.mulf %51, %55 : vector<8x4xf32>
    %57 = vector.extract_strided_slice %56 {offsets = [0, 0], sizes = [8, 1], strides = [1, 1]} : vector<8x4xf32> to vector<8x1xf32>
    %58 = vector.extract_strided_slice %5 {offsets = [0, 0], sizes = [8, 8], strides = [1, 1]} : vector<8x32xf32> to vector<8x8xf32>
    %59 = vector.broadcast %57 : vector<8x1xf32> to vector<8x8xf32>
    %60 = arith.mulf %59, %58 : vector<8x8xf32>
    %61 = vector.extract_strided_slice %56 {offsets = [0, 1], sizes = [8, 1], strides = [1, 1]} : vector<8x4xf32> to vector<8x1xf32>
    %62 = vector.extract_strided_slice %5 {offsets = [0, 8], sizes = [8, 8], strides = [1, 1]} : vector<8x32xf32> to vector<8x8xf32>
    %63 = vector.broadcast %61 : vector<8x1xf32> to vector<8x8xf32>
    %64 = arith.mulf %63, %62 : vector<8x8xf32>
    %65 = arith.addf %60, %64 : vector<8x8xf32>
    %66 = vector.extract_strided_slice %56 {offsets = [0, 2], sizes = [8, 1], strides = [1, 1]} : vector<8x4xf32> to vector<8x1xf32>
    %67 = vector.extract_strided_slice %5 {offsets = [0, 16], sizes = [8, 8], strides = [1, 1]} : vector<8x32xf32> to vector<8x8xf32>
    %68 = vector.broadcast %66 : vector<8x1xf32> to vector<8x8xf32>
    %69 = arith.mulf %68, %67 : vector<8x8xf32>
    %70 = arith.addf %65, %69 : vector<8x8xf32>
    %71 = vector.extract_strided_slice %56 {offsets = [0, 3], sizes = [8, 1], strides = [1, 1]} : vector<8x4xf32> to vector<8x1xf32>
    %72 = vector.extract_strided_slice %5 {offsets = [0, 24], sizes = [8, 8], strides = [1, 1]} : vector<8x32xf32> to vector<8x8xf32>
    %73 = vector.broadcast %71 : vector<8x1xf32> to vector<8x8xf32>
    %74 = arith.mulf %73, %72 : vector<8x8xf32>
    %75 = arith.addf %70, %74 : vector<8x8xf32>
    %76 = vector.extract_strided_slice %9 {offsets = [0, 8], sizes = [8, 8], strides = [1, 1]} : vector<8x32xf32> to vector<8x8xf32>
    %77 = vector.extract_strided_slice %4 {offsets = [0, 0], sizes = [8, 8], strides = [1, 1]} : vector<8x32xf32> to vector<8x8xf32>
    %78 = arith.mulf %76, %77 : vector<8x8xf32>
    %cst_30 = arith.constant dense<0.000000e+00> : vector<8xf32>
    %79 = vector.multi_reduction <add>, %78, %cst_30 [1] : vector<8x8xf32> to vector<8xf32>
    %80 = vector.shape_cast %79 : vector<8xf32> to vector<8x1xf32>
    %81 = vector.extract_strided_slice %4 {offsets = [0, 8], sizes = [8, 8], strides = [1, 1]} : vector<8x32xf32> to vector<8x8xf32>
    %82 = arith.mulf %76, %81 : vector<8x8xf32>
    %cst_31 = arith.constant dense<0.000000e+00> : vector<8xf32>
    %83 = vector.multi_reduction <add>, %82, %cst_31 [1] : vector<8x8xf32> to vector<8xf32>
    %84 = vector.shape_cast %83 : vector<8xf32> to vector<8x1xf32>
    %85 = vector.extract_strided_slice %4 {offsets = [0, 16], sizes = [8, 8], strides = [1, 1]} : vector<8x32xf32> to vector<8x8xf32>
    %86 = arith.mulf %76, %85 : vector<8x8xf32>
    %cst_32 = arith.constant dense<0.000000e+00> : vector<8xf32>
    %87 = vector.multi_reduction <add>, %86, %cst_32 [1] : vector<8x8xf32> to vector<8xf32>
    %88 = vector.shape_cast %87 : vector<8xf32> to vector<8x1xf32>
    %89 = vector.extract_strided_slice %4 {offsets = [0, 24], sizes = [8, 8], strides = [1, 1]} : vector<8x32xf32> to vector<8x8xf32>
    %90 = arith.mulf %76, %89 : vector<8x8xf32>
    %cst_33 = arith.constant dense<0.000000e+00> : vector<8xf32>
    %91 = vector.multi_reduction <add>, %90, %cst_33 [1] : vector<8x8xf32> to vector<8xf32>
    %92 = vector.shape_cast %91 : vector<8xf32> to vector<8x1xf32>
    %93 = tpu.concatenate %80, %84, %88, %92 in 1 : vector<8x1xf32>, vector<8x1xf32>, vector<8x1xf32>, vector<8x1xf32> -> vector<8x4xf32>
    %cst_34 = arith.constant dense<0xFF800000> : vector<8xf32>
    %94 = vector.multi_reduction <maximumf>, %93, %cst_34 [1] : vector<8x4xf32> to vector<8xf32>
    %95 = vector.shape_cast %94 : vector<8xf32> to vector<8x1xf32>
    %96 = vector.broadcast %95 : vector<8x1xf32> to vector<8x4xf32>
    %97 = arith.subf %93, %96 : vector<8x4xf32>
    %98 = math.exp %97 : vector<8x4xf32>
    %cst_35 = arith.constant dense<0.000000e+00> : vector<8xf32>
    %99 = vector.multi_reduction <add>, %98, %cst_35 [1] : vector<8x4xf32> to vector<8xf32>
    %100 = vector.shape_cast %99 : vector<8xf32> to vector<8x1xf32>
    %101 = tpu.reciprocal %100 {approx = true} : vector<8x1xf32> -> vector<8x1xf32>
    %102 = vector.broadcast %101 : vector<8x1xf32> to vector<8x4xf32>
    %103 = arith.mulf %98, %102 : vector<8x4xf32>
    %104 = vector.extract_strided_slice %103 {offsets = [0, 0], sizes = [8, 1], strides = [1, 1]} : vector<8x4xf32> to vector<8x1xf32>
    %105 = vector.extract_strided_slice %5 {offsets = [0, 0], sizes = [8, 8], strides = [1, 1]} : vector<8x32xf32> to vector<8x8xf32>
    %106 = vector.broadcast %104 : vector<8x1xf32> to vector<8x8xf32>
    %107 = arith.mulf %106, %105 : vector<8x8xf32>
    %108 = vector.extract_strided_slice %103 {offsets = [0, 1], sizes = [8, 1], strides = [1, 1]} : vector<8x4xf32> to vector<8x1xf32>
    %109 = vector.extract_strided_slice %5 {offsets = [0, 8], sizes = [8, 8], strides = [1, 1]} : vector<8x32xf32> to vector<8x8xf32>
    %110 = vector.broadcast %108 : vector<8x1xf32> to vector<8x8xf32>
    %111 = arith.mulf %110, %109 : vector<8x8xf32>
    %112 = arith.addf %107, %111 : vector<8x8xf32>
    %113 = vector.extract_strided_slice %103 {offsets = [0, 2], sizes = [8, 1], strides = [1, 1]} : vector<8x4xf32> to vector<8x1xf32>
    %114 = vector.extract_strided_slice %5 {offsets = [0, 16], sizes = [8, 8], strides = [1, 1]} : vector<8x32xf32> to vector<8x8xf32>
    %115 = vector.broadcast %113 : vector<8x1xf32> to vector<8x8xf32>
    %116 = arith.mulf %115, %114 : vector<8x8xf32>
    %117 = arith.addf %112, %116 : vector<8x8xf32>
    %118 = vector.extract_strided_slice %103 {offsets = [0, 3], sizes = [8, 1], strides = [1, 1]} : vector<8x4xf32> to vector<8x1xf32>
    %119 = vector.extract_strided_slice %5 {offsets = [0, 24], sizes = [8, 8], strides = [1, 1]} : vector<8x32xf32> to vector<8x8xf32>
    %120 = vector.broadcast %118 : vector<8x1xf32> to vector<8x8xf32>
    %121 = arith.mulf %120, %119 : vector<8x8xf32>
    %122 = arith.addf %117, %121 : vector<8x8xf32>
    %123 = vector.extract_strided_slice %9 {offsets = [0, 16], sizes = [8, 8], strides = [1, 1]} : vector<8x32xf32> to vector<8x8xf32>
    %124 = vector.extract_strided_slice %4 {offsets = [0, 0], sizes = [8, 8], strides = [1, 1]} : vector<8x32xf32> to vector<8x8xf32>
    %125 = arith.mulf %123, %124 : vector<8x8xf32>
    %cst_36 = arith.constant dense<0.000000e+00> : vector<8xf32>
    %126 = vector.multi_reduction <add>, %125, %cst_36 [1] : vector<8x8xf32> to vector<8xf32>
    %127 = vector.shape_cast %126 : vector<8xf32> to vector<8x1xf32>
    %128 = vector.extract_strided_slice %4 {offsets = [0, 8], sizes = [8, 8], strides = [1, 1]} : vector<8x32xf32> to vector<8x8xf32>
    %129 = arith.mulf %123, %128 : vector<8x8xf32>
    %cst_37 = arith.constant dense<0.000000e+00> : vector<8xf32>
    %130 = vector.multi_reduction <add>, %129, %cst_37 [1] : vector<8x8xf32> to vector<8xf32>
    %131 = vector.shape_cast %130 : vector<8xf32> to vector<8x1xf32>
    %132 = vector.extract_strided_slice %4 {offsets = [0, 16], sizes = [8, 8], strides = [1, 1]} : vector<8x32xf32> to vector<8x8xf32>
    %133 = arith.mulf %123, %132 : vector<8x8xf32>
    %cst_38 = arith.constant dense<0.000000e+00> : vector<8xf32>
    %134 = vector.multi_reduction <add>, %133, %cst_38 [1] : vector<8x8xf32> to vector<8xf32>
    %135 = vector.shape_cast %134 : vector<8xf32> to vector<8x1xf32>
    %136 = vector.extract_strided_slice %4 {offsets = [0, 24], sizes = [8, 8], strides = [1, 1]} : vector<8x32xf32> to vector<8x8xf32>
    %137 = arith.mulf %123, %136 : vector<8x8xf32>
    %cst_39 = arith.constant dense<0.000000e+00> : vector<8xf32>
    %138 = vector.multi_reduction <add>, %137, %cst_39 [1] : vector<8x8xf32> to vector<8xf32>
    %139 = vector.shape_cast %138 : vector<8xf32> to vector<8x1xf32>
    %140 = tpu.concatenate %127, %131, %135, %139 in 1 : vector<8x1xf32>, vector<8x1xf32>, vector<8x1xf32>, vector<8x1xf32> -> vector<8x4xf32>
    %cst_40 = arith.constant dense<0xFF800000> : vector<8xf32>
    %141 = vector.multi_reduction <maximumf>, %140, %cst_40 [1] : vector<8x4xf32> to vector<8xf32>
    %142 = vector.shape_cast %141 : vector<8xf32> to vector<8x1xf32>
    %143 = vector.broadcast %142 : vector<8x1xf32> to vector<8x4xf32>
    %144 = arith.subf %140, %143 : vector<8x4xf32>
    %145 = math.exp %144 : vector<8x4xf32>
    %cst_41 = arith.constant dense<0.000000e+00> : vector<8xf32>
    %146 = vector.multi_reduction <add>, %145, %cst_41 [1] : vector<8x4xf32> to vector<8xf32>
    %147 = vector.shape_cast %146 : vector<8xf32> to vector<8x1xf32>
    %148 = tpu.reciprocal %147 {approx = true} : vector<8x1xf32> -> vector<8x1xf32>
    %149 = vector.broadcast %148 : vector<8x1xf32> to vector<8x4xf32>
    %150 = arith.mulf %145, %149 : vector<8x4xf32>
    %151 = vector.extract_strided_slice %150 {offsets = [0, 0], sizes = [8, 1], strides = [1, 1]} : vector<8x4xf32> to vector<8x1xf32>
    %152 = vector.extract_strided_slice %5 {offsets = [0, 0], sizes = [8, 8], strides = [1, 1]} : vector<8x32xf32> to vector<8x8xf32>
    %153 = vector.broadcast %151 : vector<8x1xf32> to vector<8x8xf32>
    %154 = arith.mulf %153, %152 : vector<8x8xf32>
    %155 = vector.extract_strided_slice %150 {offsets = [0, 1], sizes = [8, 1], strides = [1, 1]} : vector<8x4xf32> to vector<8x1xf32>
    %156 = vector.extract_strided_slice %5 {offsets = [0, 8], sizes = [8, 8], strides = [1, 1]} : vector<8x32xf32> to vector<8x8xf32>
    %157 = vector.broadcast %155 : vector<8x1xf32> to vector<8x8xf32>
    %158 = arith.mulf %157, %156 : vector<8x8xf32>
    %159 = arith.addf %154, %158 : vector<8x8xf32>
    %160 = vector.extract_strided_slice %150 {offsets = [0, 2], sizes = [8, 1], strides = [1, 1]} : vector<8x4xf32> to vector<8x1xf32>
    %161 = vector.extract_strided_slice %5 {offsets = [0, 16], sizes = [8, 8], strides = [1, 1]} : vector<8x32xf32> to vector<8x8xf32>
    %162 = vector.broadcast %160 : vector<8x1xf32> to vector<8x8xf32>
    %163 = arith.mulf %162, %161 : vector<8x8xf32>
    %164 = arith.addf %159, %163 : vector<8x8xf32>
    %165 = vector.extract_strided_slice %150 {offsets = [0, 3], sizes = [8, 1], strides = [1, 1]} : vector<8x4xf32> to vector<8x1xf32>
    %166 = vector.extract_strided_slice %5 {offsets = [0, 24], sizes = [8, 8], strides = [1, 1]} : vector<8x32xf32> to vector<8x8xf32>
    %167 = vector.broadcast %165 : vector<8x1xf32> to vector<8x8xf32>
    %168 = arith.mulf %167, %166 : vector<8x8xf32>
    %169 = arith.addf %164, %168 : vector<8x8xf32>
    %170 = vector.extract_strided_slice %9 {offsets = [0, 24], sizes = [8, 8], strides = [1, 1]} : vector<8x32xf32> to vector<8x8xf32>
    %171 = vector.extract_strided_slice %4 {offsets = [0, 0], sizes = [8, 8], strides = [1, 1]} : vector<8x32xf32> to vector<8x8xf32>
    %172 = arith.mulf %170, %171 : vector<8x8xf32>
    %cst_42 = arith.constant dense<0.000000e+00> : vector<8xf32>
    %173 = vector.multi_reduction <add>, %172, %cst_42 [1] : vector<8x8xf32> to vector<8xf32>
    %174 = vector.shape_cast %173 : vector<8xf32> to vector<8x1xf32>
    %175 = vector.extract_strided_slice %4 {offsets = [0, 8], sizes = [8, 8], strides = [1, 1]} : vector<8x32xf32> to vector<8x8xf32>
    %176 = arith.mulf %170, %175 : vector<8x8xf32>
    %cst_43 = arith.constant dense<0.000000e+00> : vector<8xf32>
    %177 = vector.multi_reduction <add>, %176, %cst_43 [1] : vector<8x8xf32> to vector<8xf32>
    %178 = vector.shape_cast %177 : vector<8xf32> to vector<8x1xf32>
    %179 = vector.extract_strided_slice %4 {offsets = [0, 16], sizes = [8, 8], strides = [1, 1]} : vector<8x32xf32> to vector<8x8xf32>
    %180 = arith.mulf %170, %179 : vector<8x8xf32>
    %cst_44 = arith.constant dense<0.000000e+00> : vector<8xf32>
    %181 = vector.multi_reduction <add>, %180, %cst_44 [1] : vector<8x8xf32> to vector<8xf32>
    %182 = vector.shape_cast %181 : vector<8xf32> to vector<8x1xf32>
    %183 = vector.extract_strided_slice %4 {offsets = [0, 24], sizes = [8, 8], strides = [1, 1]} : vector<8x32xf32> to vector<8x8xf32>
    %184 = arith.mulf %170, %183 : vector<8x8xf32>
    %cst_45 = arith.constant dense<0.000000e+00> : vector<8xf32>
    %185 = vector.multi_reduction <add>, %184, %cst_45 [1] : vector<8x8xf32> to vector<8xf32>
    %186 = vector.shape_cast %185 : vector<8xf32> to vector<8x1xf32>
    %187 = tpu.concatenate %174, %178, %182, %186 in 1 : vector<8x1xf32>, vector<8x1xf32>, vector<8x1xf32>, vector<8x1xf32> -> vector<8x4xf32>
    %cst_46 = arith.constant dense<0xFF800000> : vector<8xf32>
    %188 = vector.multi_reduction <maximumf>, %187, %cst_46 [1] : vector<8x4xf32> to vector<8xf32>
    %189 = vector.shape_cast %188 : vector<8xf32> to vector<8x1xf32>
    %190 = vector.broadcast %189 : vector<8x1xf32> to vector<8x4xf32>
    %191 = arith.subf %187, %190 : vector<8x4xf32>
    %192 = math.exp %191 : vector<8x4xf32>
    %cst_47 = arith.constant dense<0.000000e+00> : vector<8xf32>
    %193 = vector.multi_reduction <add>, %192, %cst_47 [1] : vector<8x4xf32> to vector<8xf32>
    %194 = vector.shape_cast %193 : vector<8xf32> to vector<8x1xf32>
    %195 = tpu.reciprocal %194 {approx = true} : vector<8x1xf32> -> vector<8x1xf32>
    %196 = vector.broadcast %195 : vector<8x1xf32> to vector<8x4xf32>
    %197 = arith.mulf %192, %196 : vector<8x4xf32>
    %198 = vector.extract_strided_slice %197 {offsets = [0, 0], sizes = [8, 1], strides = [1, 1]} : vector<8x4xf32> to vector<8x1xf32>
    %199 = vector.extract_strided_slice %5 {offsets = [0, 0], sizes = [8, 8], strides = [1, 1]} : vector<8x32xf32> to vector<8x8xf32>
    %200 = vector.broadcast %198 : vector<8x1xf32> to vector<8x8xf32>
    %201 = arith.mulf %200, %199 : vector<8x8xf32>
    %202 = vector.extract_strided_slice %197 {offsets = [0, 1], sizes = [8, 1], strides = [1, 1]} : vector<8x4xf32> to vector<8x1xf32>
    %203 = vector.extract_strided_slice %5 {offsets = [0, 8], sizes = [8, 8], strides = [1, 1]} : vector<8x32xf32> to vector<8x8xf32>
    %204 = vector.broadcast %202 : vector<8x1xf32> to vector<8x8xf32>
    %205 = arith.mulf %204, %203 : vector<8x8xf32>
    %206 = arith.addf %201, %205 : vector<8x8xf32>
    %207 = vector.extract_strided_slice %197 {offsets = [0, 2], sizes = [8, 1], strides = [1, 1]} : vector<8x4xf32> to vector<8x1xf32>
    %208 = vector.extract_strided_slice %5 {offsets = [0, 16], sizes = [8, 8], strides = [1, 1]} : vector<8x32xf32> to vector<8x8xf32>
    %209 = vector.broadcast %207 : vector<8x1xf32> to vector<8x8xf32>
    %210 = arith.mulf %209, %208 : vector<8x8xf32>
    %211 = arith.addf %206, %210 : vector<8x8xf32>
    %212 = vector.extract_strided_slice %197 {offsets = [0, 3], sizes = [8, 1], strides = [1, 1]} : vector<8x4xf32> to vector<8x1xf32>
    %213 = vector.extract_strided_slice %5 {offsets = [0, 24], sizes = [8, 8], strides = [1, 1]} : vector<8x32xf32> to vector<8x8xf32>
    %214 = vector.broadcast %212 : vector<8x1xf32> to vector<8x8xf32>
    %215 = arith.mulf %214, %213 : vector<8x8xf32>
    %216 = arith.addf %211, %215 : vector<8x8xf32>
    %217 = tpu.concatenate %75, %122, %169, %216 in 1 : vector<8x8xf32>, vector<8x8xf32>, vector<8x8xf32>, vector<8x8xf32> -> vector<8x32xf32>
    %cst_48 = arith.constant dense<0.000000e+00> : vector<8x32xf32>
    %218 = tpu.matmul %217, %26, %cst_48 {dimension_numbers = #tpu.dot_dimension_numbers<[1], [0], [0], [1], [0, 0, 1, 1], [], []>} : vector<8x32xf32>, vector<32x32xf32>, vector<8x32xf32> -> vector<8x32xf32>
    %219 = vector.broadcast %14 : vector<1x32xf32> to vector<8x32xf32>
    %220 = arith.addf %218, %219 : vector<8x32xf32>
    %cst_49 = arith.constant dense<0.000000e+00> : vector<8x32xf32>
    %221 = tpu.matmul %220, %27, %cst_49 {dimension_numbers = #tpu.dot_dimension_numbers<[1], [0], [0], [1], [0, 0, 1, 1], [], []>} : vector<8x32xf32>, vector<32x32xf32>, vector<8x32xf32> -> vector<8x32xf32>
    %222 = vector.extract_strided_slice %221 {offsets = [0, 0], sizes = [8, 8], strides = [1, 1]} : vector<8x32xf32> to vector<8x8xf32>
    %223 = vector.extract_strided_slice %10 {offsets = [0, 0], sizes = [8, 8], strides = [1, 1]} : vector<8x32xf32> to vector<8x8xf32>
    %224 = arith.mulf %222, %223 : vector<8x8xf32>
    %cst_50 = arith.constant dense<0.000000e+00> : vector<8xf32>
    %225 = vector.multi_reduction <add>, %224, %cst_50 [1] : vector<8x8xf32> to vector<8xf32>
    %226 = vector.shape_cast %225 : vector<8xf32> to vector<8x1xf32>
    %227 = vector.extract_strided_slice %10 {offsets = [0, 8], sizes = [8, 8], strides = [1, 1]} : vector<8x32xf32> to vector<8x8xf32>
    %228 = arith.mulf %222, %227 : vector<8x8xf32>
    %cst_51 = arith.constant dense<0.000000e+00> : vector<8xf32>
    %229 = vector.multi_reduction <add>, %228, %cst_51 [1] : vector<8x8xf32> to vector<8xf32>
    %230 = vector.shape_cast %229 : vector<8xf32> to vector<8x1xf32>
    %231 = vector.extract_strided_slice %10 {offsets = [0, 16], sizes = [8, 8], strides = [1, 1]} : vector<8x32xf32> to vector<8x8xf32>
    %232 = arith.mulf %222, %231 : vector<8x8xf32>
    %cst_52 = arith.constant dense<0.000000e+00> : vector<8xf32>
    %233 = vector.multi_reduction <add>, %232, %cst_52 [1] : vector<8x8xf32> to vector<8xf32>
    %234 = vector.shape_cast %233 : vector<8xf32> to vector<8x1xf32>
    %235 = vector.extract_strided_slice %10 {offsets = [0, 24], sizes = [8, 8], strides = [1, 1]} : vector<8x32xf32> to vector<8x8xf32>
    %236 = arith.mulf %222, %235 : vector<8x8xf32>
    %cst_53 = arith.constant dense<0.000000e+00> : vector<8xf32>
    %237 = vector.multi_reduction <add>, %236, %cst_53 [1] : vector<8x8xf32> to vector<8xf32>
    %238 = vector.shape_cast %237 : vector<8xf32> to vector<8x1xf32>
    %239 = tpu.concatenate %226, %230, %234, %238 in 1 : vector<8x1xf32>, vector<8x1xf32>, vector<8x1xf32>, vector<8x1xf32> -> vector<8x4xf32>
    %cst_54 = arith.constant dense<0xFF800000> : vector<8xf32>
    %240 = vector.multi_reduction <maximumf>, %239, %cst_54 [1] : vector<8x4xf32> to vector<8xf32>
    %241 = vector.shape_cast %240 : vector<8xf32> to vector<8x1xf32>
    %242 = vector.broadcast %241 : vector<8x1xf32> to vector<8x4xf32>
    %243 = arith.subf %239, %242 : vector<8x4xf32>
    %244 = math.exp %243 : vector<8x4xf32>
    %cst_55 = arith.constant dense<0.000000e+00> : vector<8xf32>
    %245 = vector.multi_reduction <add>, %244, %cst_55 [1] : vector<8x4xf32> to vector<8xf32>
    %246 = vector.shape_cast %245 : vector<8xf32> to vector<8x1xf32>
    %247 = tpu.reciprocal %246 {approx = true} : vector<8x1xf32> -> vector<8x1xf32>
    %248 = vector.broadcast %247 : vector<8x1xf32> to vector<8x4xf32>
    %249 = arith.mulf %244, %248 : vector<8x4xf32>
    %250 = vector.extract_strided_slice %249 {offsets = [0, 0], sizes = [8, 1], strides = [1, 1]} : vector<8x4xf32> to vector<8x1xf32>
    %251 = vector.extract_strided_slice %11 {offsets = [0, 0], sizes = [8, 8], strides = [1, 1]} : vector<8x32xf32> to vector<8x8xf32>
    %252 = vector.broadcast %250 : vector<8x1xf32> to vector<8x8xf32>
    %253 = arith.mulf %252, %251 : vector<8x8xf32>
    %254 = vector.extract_strided_slice %249 {offsets = [0, 1], sizes = [8, 1], strides = [1, 1]} : vector<8x4xf32> to vector<8x1xf32>
    %255 = vector.extract_strided_slice %11 {offsets = [0, 8], sizes = [8, 8], strides = [1, 1]} : vector<8x32xf32> to vector<8x8xf32>
    %256 = vector.broadcast %254 : vector<8x1xf32> to vector<8x8xf32>
    %257 = arith.mulf %256, %255 : vector<8x8xf32>
    %258 = arith.addf %253, %257 : vector<8x8xf32>
    %259 = vector.extract_strided_slice %249 {offsets = [0, 2], sizes = [8, 1], strides = [1, 1]} : vector<8x4xf32> to vector<8x1xf32>
    %260 = vector.extract_strided_slice %11 {offsets = [0, 16], sizes = [8, 8], strides = [1, 1]} : vector<8x32xf32> to vector<8x8xf32>
    %261 = vector.broadcast %259 : vector<8x1xf32> to vector<8x8xf32>
    %262 = arith.mulf %261, %260 : vector<8x8xf32>
    %263 = arith.addf %258, %262 : vector<8x8xf32>
    %264 = vector.extract_strided_slice %249 {offsets = [0, 3], sizes = [8, 1], strides = [1, 1]} : vector<8x4xf32> to vector<8x1xf32>
    %265 = vector.extract_strided_slice %11 {offsets = [0, 24], sizes = [8, 8], strides = [1, 1]} : vector<8x32xf32> to vector<8x8xf32>
    %266 = vector.broadcast %264 : vector<8x1xf32> to vector<8x8xf32>
    %267 = arith.mulf %266, %265 : vector<8x8xf32>
    %268 = arith.addf %263, %267 : vector<8x8xf32>
    %269 = vector.extract_strided_slice %221 {offsets = [0, 8], sizes = [8, 8], strides = [1, 1]} : vector<8x32xf32> to vector<8x8xf32>
    %270 = vector.extract_strided_slice %10 {offsets = [0, 0], sizes = [8, 8], strides = [1, 1]} : vector<8x32xf32> to vector<8x8xf32>
    %271 = arith.mulf %269, %270 : vector<8x8xf32>
    %cst_56 = arith.constant dense<0.000000e+00> : vector<8xf32>
    %272 = vector.multi_reduction <add>, %271, %cst_56 [1] : vector<8x8xf32> to vector<8xf32>
    %273 = vector.shape_cast %272 : vector<8xf32> to vector<8x1xf32>
    %274 = vector.extract_strided_slice %10 {offsets = [0, 8], sizes = [8, 8], strides = [1, 1]} : vector<8x32xf32> to vector<8x8xf32>
    %275 = arith.mulf %269, %274 : vector<8x8xf32>
    %cst_57 = arith.constant dense<0.000000e+00> : vector<8xf32>
    %276 = vector.multi_reduction <add>, %275, %cst_57 [1] : vector<8x8xf32> to vector<8xf32>
    %277 = vector.shape_cast %276 : vector<8xf32> to vector<8x1xf32>
    %278 = vector.extract_strided_slice %10 {offsets = [0, 16], sizes = [8, 8], strides = [1, 1]} : vector<8x32xf32> to vector<8x8xf32>
    %279 = arith.mulf %269, %278 : vector<8x8xf32>
    %cst_58 = arith.constant dense<0.000000e+00> : vector<8xf32>
    %280 = vector.multi_reduction <add>, %279, %cst_58 [1] : vector<8x8xf32> to vector<8xf32>
    %281 = vector.shape_cast %280 : vector<8xf32> to vector<8x1xf32>
    %282 = vector.extract_strided_slice %10 {offsets = [0, 24], sizes = [8, 8], strides = [1, 1]} : vector<8x32xf32> to vector<8x8xf32>
    %283 = arith.mulf %269, %282 : vector<8x8xf32>
    %cst_59 = arith.constant dense<0.000000e+00> : vector<8xf32>
    %284 = vector.multi_reduction <add>, %283, %cst_59 [1] : vector<8x8xf32> to vector<8xf32>
    %285 = vector.shape_cast %284 : vector<8xf32> to vector<8x1xf32>
    %286 = tpu.concatenate %273, %277, %281, %285 in 1 : vector<8x1xf32>, vector<8x1xf32>, vector<8x1xf32>, vector<8x1xf32> -> vector<8x4xf32>
    %cst_60 = arith.constant dense<0xFF800000> : vector<8xf32>
    %287 = vector.multi_reduction <maximumf>, %286, %cst_60 [1] : vector<8x4xf32> to vector<8xf32>
    %288 = vector.shape_cast %287 : vector<8xf32> to vector<8x1xf32>
    %289 = vector.broadcast %288 : vector<8x1xf32> to vector<8x4xf32>
    %290 = arith.subf %286, %289 : vector<8x4xf32>
    %291 = math.exp %290 : vector<8x4xf32>
    %cst_61 = arith.constant dense<0.000000e+00> : vector<8xf32>
    %292 = vector.multi_reduction <add>, %291, %cst_61 [1] : vector<8x4xf32> to vector<8xf32>
    %293 = vector.shape_cast %292 : vector<8xf32> to vector<8x1xf32>
    %294 = tpu.reciprocal %293 {approx = true} : vector<8x1xf32> -> vector<8x1xf32>
    %295 = vector.broadcast %294 : vector<8x1xf32> to vector<8x4xf32>
    %296 = arith.mulf %291, %295 : vector<8x4xf32>
    %297 = vector.extract_strided_slice %296 {offsets = [0, 0], sizes = [8, 1], strides = [1, 1]} : vector<8x4xf32> to vector<8x1xf32>
    %298 = vector.extract_strided_slice %11 {offsets = [0, 0], sizes = [8, 8], strides = [1, 1]} : vector<8x32xf32> to vector<8x8xf32>
    %299 = vector.broadcast %297 : vector<8x1xf32> to vector<8x8xf32>
    %300 = arith.mulf %299, %298 : vector<8x8xf32>
    %301 = vector.extract_strided_slice %296 {offsets = [0, 1], sizes = [8, 1], strides = [1, 1]} : vector<8x4xf32> to vector<8x1xf32>
    %302 = vector.extract_strided_slice %11 {offsets = [0, 8], sizes = [8, 8], strides = [1, 1]} : vector<8x32xf32> to vector<8x8xf32>
    %303 = vector.broadcast %301 : vector<8x1xf32> to vector<8x8xf32>
    %304 = arith.mulf %303, %302 : vector<8x8xf32>
    %305 = arith.addf %300, %304 : vector<8x8xf32>
    %306 = vector.extract_strided_slice %296 {offsets = [0, 2], sizes = [8, 1], strides = [1, 1]} : vector<8x4xf32> to vector<8x1xf32>
    %307 = vector.extract_strided_slice %11 {offsets = [0, 16], sizes = [8, 8], strides = [1, 1]} : vector<8x32xf32> to vector<8x8xf32>
    %308 = vector.broadcast %306 : vector<8x1xf32> to vector<8x8xf32>
    %309 = arith.mulf %308, %307 : vector<8x8xf32>
    %310 = arith.addf %305, %309 : vector<8x8xf32>
    %311 = vector.extract_strided_slice %296 {offsets = [0, 3], sizes = [8, 1], strides = [1, 1]} : vector<8x4xf32> to vector<8x1xf32>
    %312 = vector.extract_strided_slice %11 {offsets = [0, 24], sizes = [8, 8], strides = [1, 1]} : vector<8x32xf32> to vector<8x8xf32>
    %313 = vector.broadcast %311 : vector<8x1xf32> to vector<8x8xf32>
    %314 = arith.mulf %313, %312 : vector<8x8xf32>
    %315 = arith.addf %310, %314 : vector<8x8xf32>
    %316 = vector.extract_strided_slice %221 {offsets = [0, 16], sizes = [8, 8], strides = [1, 1]} : vector<8x32xf32> to vector<8x8xf32>
    %317 = vector.extract_strided_slice %10 {offsets = [0, 0], sizes = [8, 8], strides = [1, 1]} : vector<8x32xf32> to vector<8x8xf32>
    %318 = arith.mulf %316, %317 : vector<8x8xf32>
    %cst_62 = arith.constant dense<0.000000e+00> : vector<8xf32>
    %319 = vector.multi_reduction <add>, %318, %cst_62 [1] : vector<8x8xf32> to vector<8xf32>
    %320 = vector.shape_cast %319 : vector<8xf32> to vector<8x1xf32>
    %321 = vector.extract_strided_slice %10 {offsets = [0, 8], sizes = [8, 8], strides = [1, 1]} : vector<8x32xf32> to vector<8x8xf32>
    %322 = arith.mulf %316, %321 : vector<8x8xf32>
    %cst_63 = arith.constant dense<0.000000e+00> : vector<8xf32>
    %323 = vector.multi_reduction <add>, %322, %cst_63 [1] : vector<8x8xf32> to vector<8xf32>
    %324 = vector.shape_cast %323 : vector<8xf32> to vector<8x1xf32>
    %325 = vector.extract_strided_slice %10 {offsets = [0, 16], sizes = [8, 8], strides = [1, 1]} : vector<8x32xf32> to vector<8x8xf32>
    %326 = arith.mulf %316, %325 : vector<8x8xf32>
    %cst_64 = arith.constant dense<0.000000e+00> : vector<8xf32>
    %327 = vector.multi_reduction <add>, %326, %cst_64 [1] : vector<8x8xf32> to vector<8xf32>
    %328 = vector.shape_cast %327 : vector<8xf32> to vector<8x1xf32>
    %329 = vector.extract_strided_slice %10 {offsets = [0, 24], sizes = [8, 8], strides = [1, 1]} : vector<8x32xf32> to vector<8x8xf32>
    %330 = arith.mulf %316, %329 : vector<8x8xf32>
    %cst_65 = arith.constant dense<0.000000e+00> : vector<8xf32>
    %331 = vector.multi_reduction <add>, %330, %cst_65 [1] : vector<8x8xf32> to vector<8xf32>
    %332 = vector.shape_cast %331 : vector<8xf32> to vector<8x1xf32>
    %333 = tpu.concatenate %320, %324, %328, %332 in 1 : vector<8x1xf32>, vector<8x1xf32>, vector<8x1xf32>, vector<8x1xf32> -> vector<8x4xf32>
    %cst_66 = arith.constant dense<0xFF800000> : vector<8xf32>
    %334 = vector.multi_reduction <maximumf>, %333, %cst_66 [1] : vector<8x4xf32> to vector<8xf32>
    %335 = vector.shape_cast %334 : vector<8xf32> to vector<8x1xf32>
    %336 = vector.broadcast %335 : vector<8x1xf32> to vector<8x4xf32>
    %337 = arith.subf %333, %336 : vector<8x4xf32>
    %338 = math.exp %337 : vector<8x4xf32>
    %cst_67 = arith.constant dense<0.000000e+00> : vector<8xf32>
    %339 = vector.multi_reduction <add>, %338, %cst_67 [1] : vector<8x4xf32> to vector<8xf32>
    %340 = vector.shape_cast %339 : vector<8xf32> to vector<8x1xf32>
    %341 = tpu.reciprocal %340 {approx = true} : vector<8x1xf32> -> vector<8x1xf32>
    %342 = vector.broadcast %341 : vector<8x1xf32> to vector<8x4xf32>
    %343 = arith.mulf %338, %342 : vector<8x4xf32>
    %344 = vector.extract_strided_slice %343 {offsets = [0, 0], sizes = [8, 1], strides = [1, 1]} : vector<8x4xf32> to vector<8x1xf32>
    %345 = vector.extract_strided_slice %11 {offsets = [0, 0], sizes = [8, 8], strides = [1, 1]} : vector<8x32xf32> to vector<8x8xf32>
    %346 = vector.broadcast %344 : vector<8x1xf32> to vector<8x8xf32>
    %347 = arith.mulf %346, %345 : vector<8x8xf32>
    %348 = vector.extract_strided_slice %343 {offsets = [0, 1], sizes = [8, 1], strides = [1, 1]} : vector<8x4xf32> to vector<8x1xf32>
    %349 = vector.extract_strided_slice %11 {offsets = [0, 8], sizes = [8, 8], strides = [1, 1]} : vector<8x32xf32> to vector<8x8xf32>
    %350 = vector.broadcast %348 : vector<8x1xf32> to vector<8x8xf32>
    %351 = arith.mulf %350, %349 : vector<8x8xf32>
    %352 = arith.addf %347, %351 : vector<8x8xf32>
    %353 = vector.extract_strided_slice %343 {offsets = [0, 2], sizes = [8, 1], strides = [1, 1]} : vector<8x4xf32> to vector<8x1xf32>
    %354 = vector.extract_strided_slice %11 {offsets = [0, 16], sizes = [8, 8], strides = [1, 1]} : vector<8x32xf32> to vector<8x8xf32>
    %355 = vector.broadcast %353 : vector<8x1xf32> to vector<8x8xf32>
    %356 = arith.mulf %355, %354 : vector<8x8xf32>
    %357 = arith.addf %352, %356 : vector<8x8xf32>
    %358 = vector.extract_strided_slice %343 {offsets = [0, 3], sizes = [8, 1], strides = [1, 1]} : vector<8x4xf32> to vector<8x1xf32>
    %359 = vector.extract_strided_slice %11 {offsets = [0, 24], sizes = [8, 8], strides = [1, 1]} : vector<8x32xf32> to vector<8x8xf32>
    %360 = vector.broadcast %358 : vector<8x1xf32> to vector<8x8xf32>
    %361 = arith.mulf %360, %359 : vector<8x8xf32>
    %362 = arith.addf %357, %361 : vector<8x8xf32>
    %363 = vector.extract_strided_slice %221 {offsets = [0, 24], sizes = [8, 8], strides = [1, 1]} : vector<8x32xf32> to vector<8x8xf32>
    %364 = vector.extract_strided_slice %10 {offsets = [0, 0], sizes = [8, 8], strides = [1, 1]} : vector<8x32xf32> to vector<8x8xf32>
    %365 = arith.mulf %363, %364 : vector<8x8xf32>
    %cst_68 = arith.constant dense<0.000000e+00> : vector<8xf32>
    %366 = vector.multi_reduction <add>, %365, %cst_68 [1] : vector<8x8xf32> to vector<8xf32>
    %367 = vector.shape_cast %366 : vector<8xf32> to vector<8x1xf32>
    %368 = vector.extract_strided_slice %10 {offsets = [0, 8], sizes = [8, 8], strides = [1, 1]} : vector<8x32xf32> to vector<8x8xf32>
    %369 = arith.mulf %363, %368 : vector<8x8xf32>
    %cst_69 = arith.constant dense<0.000000e+00> : vector<8xf32>
    %370 = vector.multi_reduction <add>, %369, %cst_69 [1] : vector<8x8xf32> to vector<8xf32>
    %371 = vector.shape_cast %370 : vector<8xf32> to vector<8x1xf32>
    %372 = vector.extract_strided_slice %10 {offsets = [0, 16], sizes = [8, 8], strides = [1, 1]} : vector<8x32xf32> to vector<8x8xf32>
    %373 = arith.mulf %363, %372 : vector<8x8xf32>
    %cst_70 = arith.constant dense<0.000000e+00> : vector<8xf32>
    %374 = vector.multi_reduction <add>, %373, %cst_70 [1] : vector<8x8xf32> to vector<8xf32>
    %375 = vector.shape_cast %374 : vector<8xf32> to vector<8x1xf32>
    %376 = vector.extract_strided_slice %10 {offsets = [0, 24], sizes = [8, 8], strides = [1, 1]} : vector<8x32xf32> to vector<8x8xf32>
    %377 = arith.mulf %363, %376 : vector<8x8xf32>
    %cst_71 = arith.constant dense<0.000000e+00> : vector<8xf32>
    %378 = vector.multi_reduction <add>, %377, %cst_71 [1] : vector<8x8xf32> to vector<8xf32>
    %379 = vector.shape_cast %378 : vector<8xf32> to vector<8x1xf32>
    %380 = tpu.concatenate %367, %371, %375, %379 in 1 : vector<8x1xf32>, vector<8x1xf32>, vector<8x1xf32>, vector<8x1xf32> -> vector<8x4xf32>
    %cst_72 = arith.constant dense<0xFF800000> : vector<8xf32>
    %381 = vector.multi_reduction <maximumf>, %380, %cst_72 [1] : vector<8x4xf32> to vector<8xf32>
    %382 = vector.shape_cast %381 : vector<8xf32> to vector<8x1xf32>
    %383 = vector.broadcast %382 : vector<8x1xf32> to vector<8x4xf32>
    %384 = arith.subf %380, %383 : vector<8x4xf32>
    %385 = math.exp %384 : vector<8x4xf32>
    %cst_73 = arith.constant dense<0.000000e+00> : vector<8xf32>
    %386 = vector.multi_reduction <add>, %385, %cst_73 [1] : vector<8x4xf32> to vector<8xf32>
    %387 = vector.shape_cast %386 : vector<8xf32> to vector<8x1xf32>
    %388 = tpu.reciprocal %387 {approx = true} : vector<8x1xf32> -> vector<8x1xf32>
    %389 = vector.broadcast %388 : vector<8x1xf32> to vector<8x4xf32>
    %390 = arith.mulf %385, %389 : vector<8x4xf32>
    %391 = vector.extract_strided_slice %390 {offsets = [0, 0], sizes = [8, 1], strides = [1, 1]} : vector<8x4xf32> to vector<8x1xf32>
    %392 = vector.extract_strided_slice %11 {offsets = [0, 0], sizes = [8, 8], strides = [1, 1]} : vector<8x32xf32> to vector<8x8xf32>
    %393 = vector.broadcast %391 : vector<8x1xf32> to vector<8x8xf32>
    %394 = arith.mulf %393, %392 : vector<8x8xf32>
    %395 = vector.extract_strided_slice %390 {offsets = [0, 1], sizes = [8, 1], strides = [1, 1]} : vector<8x4xf32> to vector<8x1xf32>
    %396 = vector.extract_strided_slice %11 {offsets = [0, 8], sizes = [8, 8], strides = [1, 1]} : vector<8x32xf32> to vector<8x8xf32>
    %397 = vector.broadcast %395 : vector<8x1xf32> to vector<8x8xf32>
    %398 = arith.mulf %397, %396 : vector<8x8xf32>
    %399 = arith.addf %394, %398 : vector<8x8xf32>
    %400 = vector.extract_strided_slice %390 {offsets = [0, 2], sizes = [8, 1], strides = [1, 1]} : vector<8x4xf32> to vector<8x1xf32>
    %401 = vector.extract_strided_slice %11 {offsets = [0, 16], sizes = [8, 8], strides = [1, 1]} : vector<8x32xf32> to vector<8x8xf32>
    %402 = vector.broadcast %400 : vector<8x1xf32> to vector<8x8xf32>
    %403 = arith.mulf %402, %401 : vector<8x8xf32>
    %404 = arith.addf %399, %403 : vector<8x8xf32>
    %405 = vector.extract_strided_slice %390 {offsets = [0, 3], sizes = [8, 1], strides = [1, 1]} : vector<8x4xf32> to vector<8x1xf32>
    %406 = vector.extract_strided_slice %11 {offsets = [0, 24], sizes = [8, 8], strides = [1, 1]} : vector<8x32xf32> to vector<8x8xf32>
    %407 = vector.broadcast %405 : vector<8x1xf32> to vector<8x8xf32>
    %408 = arith.mulf %407, %406 : vector<8x8xf32>
    %409 = arith.addf %404, %408 : vector<8x8xf32>
    %410 = tpu.concatenate %268, %315, %362, %409 in 1 : vector<8x8xf32>, vector<8x8xf32>, vector<8x8xf32>, vector<8x8xf32> -> vector<8x32xf32>
    %cst_74 = arith.constant dense<0.000000e+00> : vector<8x32xf32>
    %411 = tpu.matmul %410, %28, %cst_74 {dimension_numbers = #tpu.dot_dimension_numbers<[1], [0], [0], [1], [0, 0, 1, 1], [], []>} : vector<8x32xf32>, vector<32x32xf32>, vector<8x32xf32> -> vector<8x32xf32>
    %412 = vector.broadcast %15 : vector<1x32xf32> to vector<8x32xf32>
    %413 = arith.addf %411, %412 : vector<8x32xf32>
    %414 = tpu.concatenate %0, %1, %220, %413, %25 in 1 : vector<8x32xf32>, vector<8x32xf32>, vector<8x32xf32>, vector<8x32xf32>, vector<8x128xf32> -> vector<8x256xf32>
    %c0_75 = arith.constant 0 : index
    %c0_76 = arith.constant 0 : index
    %415 = vector.load %arg9[%c0_75, %c0_76] : memref<8x256xf32, #tpu.memory_space<vmem>>, vector<8x256xf32>
    tpu.vector_store %arg9[%c0_75, %c0_76], %414 {strides = array<i32>} : memref<8x256xf32, #tpu.memory_space<vmem>>, vector<8x256xf32>,
    return
  }
  func.func @transform_0(%arg0: i32) -> (i32, i32) {
    %c0_i32 = arith.constant 0 : i32
    %c0_i32_0 = arith.constant 0 : i32
    %c0_i32_1 = arith.constant 0 : i32
    return %c0_i32, %c0_i32_0 : i32, i32
  }
  func.func @transform_1(%arg0: i32) -> (i32, i32) {
    %c0_i32 = arith.constant 0 : i32
    %c0_i32_0 = arith.constant 0 : i32
    %c0_i32_1 = arith.constant 0 : i32
    return %c0_i32, %c0_i32_0 : i32, i32
  }
  func.func @transform_2(%arg0: i32) -> (i32, i32) {
    %c0_i32 = arith.constant 0 : i32
    %c0_i32_0 = arith.constant 0 : i32
    %c0_i32_1 = arith.constant 0 : i32
    return %c0_i32, %c0_i32_0 : i32, i32
  }
  func.func @transform_3(%arg0: i32) -> (i32, i32) {
    %c0_i32 = arith.constant 0 : i32
    %c0_i32_0 = arith.constant 0 : i32
    %c0_i32_1 = arith.constant 0 : i32
    return %c0_i32, %c0_i32_0 : i32, i32
  }
  func.func @transform_4(%arg0: i32) -> (i32, i32) {
    %c0_i32 = arith.constant 0 : i32
    %c0_i32_0 = arith.constant 0 : i32
    %c0_i32_1 = arith.constant 0 : i32
    return %c0_i32, %c0_i32_0 : i32, i32
  }
  func.func @transform_5(%arg0: i32) -> (i32, i32) {
    %c0_i32 = arith.constant 0 : i32
    %c0_i32_0 = arith.constant 0 : i32
    %c0_i32_1 = arith.constant 0 : i32
    return %c0_i32, %c0_i32_0 : i32, i32
  }
  func.func @transform_6(%arg0: i32) -> (i32, i32) {
    %c0_i32 = arith.constant 0 : i32
    %c0_i32_0 = arith.constant 0 : i32
    %c0_i32_1 = arith.constant 0 : i32
    return %c0_i32, %c0_i32_0 : i32, i32
  }
  func.func @transform_7(%arg0: i32) -> (i32, i32) {
    %c0_i32 = arith.constant 0 : i32
    %c0_i32_0 = arith.constant 0 : i32
    %c0_i32_1 = arith.constant 0 : i32
    return %c0_i32, %c0_i32_0 : i32, i32
  }
  func.func @transform_8(%arg0: i32) -> (i32, i32) {
    %c0_i32 = arith.constant 0 : i32
    %c0_i32_0 = arith.constant 0 : i32
    %c0_i32_1 = arith.constant 0 : i32
    return %c0_i32, %c0_i32_0 : i32, i32
  }
}

</mosaic_0001>

<llo_original>
// kernel: pred_model_fused.1
$region0: #{pred_model_fused.1}
  #allocation0 [shape = 'u32[]', space=smem, size = 0x4, offset = 0x4, fixed_abs, tag = 'smem constant byte address 0x4 - core index']
  #allocation1 [shape = 'u32[144,128]{1,0:T(1,128)}', space=vmem, size = 0x12000, scoped, tag = 'internal scratch']
  %s0 = inlined_call_operand.vmem [shape: f32[8,32], index: 0, kind: input, shape index: {}]
  %s1 = inlined_call_operand.hbm [shape: f32[8,32], index: 1, kind: input, shape index: {}]
  %s2 = inlined_call_operand.hbm [shape: f32[32,96], index: 2, kind: input, shape index: {}]
  %s3 = inlined_call_operand.hbm [shape: f32[32,128], index: 3, kind: input, shape index: {}]
  %s4 = inlined_call_operand.hbm [shape: f32[32,96], index: 4, kind: input, shape index: {}]
  %s5 = inlined_call_operand.vmem [shape: f32[1,96], index: 5, kind: input, shape index: {}]
  %s6 = inlined_call_operand.hbm [shape: f32[32,128], index: 6, kind: input, shape index: {}]
  %s7 = inlined_call_operand.vmem [shape: f32[1,128], index: 7, kind: input, shape index: {}]
  %s8 = inlined_call_operand.vmem [shape: f32[8,256], index: 8, kind: output, shape index: {}]
  %s9 = sld [smem:[#allocation0]]
  $region62: #{pred_model_fused.1} parent=0
    _
  %s11 = ssub.s32 1, %s9
  %s12 = scalar_select 0, %s11, %s9
  $region1: #{pred_model_fused.1} parent=0
    #allocation2 [shape = 'u8[4096]{0}', space=vmem, size = 0x1000, scoped, tag = 'input window, operand 1, single buffered']
    #allocation3 [shape = 's32[1]{0}', space=sflag, size = 0x4, scoped, tag = 'scoped memory for pred_model_fused.1']
    #allocation4 [shape = 'u8[16384]{0}', space=vmem, size = 0x4000, scoped, tag = 'input window, operand 2, single buffered']
    #allocation5 [shape = 's32[1]{0}', space=sflag, size = 0x4, scoped, tag = 'scoped memory for pred_model_fused.1']
    #allocation6 [shape = 'u8[16384]{0}', space=vmem, size = 0x4000, scoped, tag = 'input window, operand 3, single buffered']
    #allocation7 [shape = 'u8[16384]{0}', space=vmem, size = 0x4000, scoped, tag = 'input window, operand 4, single buffered']
    #allocation8 [shape = 's32[1]{0}', space=sflag, size = 0x4, scoped, tag = 'scoped memory for pred_model_fused.1']
    #allocation9 [shape = 'u8[16384]{0}', space=vmem, size = 0x4000, scoped, tag = 'input window, operand 6, single buffered']
    %13 = vsyncpa [#allocation3], 0
    %14 = vsyncpa [#allocation5], 0
    %15 = vsyncpa [#allocation8], 0
    // Predicated region
    $region2: #{pred_model_fused.1} parent=1 // pred_check
      _
    $region3: #{pred_model_fused.1} parent=1 // pred_check_branch
      %17 = sbr.rel (0) target = $region5
    $region4: #{pred_model_fused.1} parent=1 // pred_region
      _
    $region5: #{pred_model_fused.1} parent=1 // pred_fallthru
      _
    // Predicated region
    $region6: #{pred_model_fused.1} parent=1 // pred_check
      _
    $region7: #{pred_model_fused.1} parent=1 // pred_check_branch
      %19 = sbr.rel (0) target = $region9
    $region8: #{pred_model_fused.1} parent=1 // pred_region
      %s21 = ssub.s32 128, 128
      %22 = vsyncadd [#allocation3], %s21
      %s24 = sshll.u32 [#allocation2], 4
      %s25 = int_to_ptr.vmem [resolvable:$true] %s24
      %27 = dma.hbm_to_vmem [thread:$0]  %s1, 128, %s25, [#allocation3]
    $region9: #{pred_model_fused.1} parent=1 // pred_fallthru
      _
    // Predicated region
    $region10: #{pred_model_fused.1} parent=1 // pred_check
      _
    $region11: #{pred_model_fused.1} parent=1 // pred_check_branch
      %29 = sbr.rel (0) target = $region13
    $region12: #{pred_model_fused.1} parent=1 // pred_region
      %s31 = ssub.s32 512, 512
      %32 = vsyncadd [#allocation5], %s31
      %s33 = sshll.u32 [#allocation4], 4
      %s34 = int_to_ptr.vmem [resolvable:$true] %s33
      %39 = dma.hbm_to_vmem [thread:$0]  %s2, 512, %s34, [#allocation5], 128, 128, 8
    $region13: #{pred_model_fused.1} parent=1 // pred_fallthru
      _
    // Predicated region
    $region14: #{pred_model_fused.1} parent=1 // pred_check
      _
    $region15: #{pred_model_fused.1} parent=1 // pred_check_branch
      %41 = sbr.rel (0) target = $region17
    $region16: #{pred_model_fused.1} parent=1 // pred_region
      %s43 = ssub.s32 512, 512
      %44 = vsyncadd [#allocation5], %s43
      %s45 = sshll.u32 [#allocation6], 4
      %s46 = int_to_ptr.vmem [resolvable:$true] %s45
      %51 = dma.hbm_to_vmem [thread:$0]  %s3, 512, %s46, [#allocation5], 128, 128, 8
    $region17: #{pred_model_fused.1} parent=1 // pred_fallthru
      _
    // Predicated region
    $region18: #{pred_model_fused.1} parent=1 // pred_check
      _
    $region19: #{pred_model_fused.1} parent=1 // pred_check_branch
      %53 = sbr.rel (0) target = $region21
    $region20: #{pred_model_fused.1} parent=1 // pred_region
      %s55 = ssub.s32 512, 512
      %56 = vsyncadd [#allocation8], %s55
      %s57 = sshll.u32 [#allocation7], 4
      %s58 = int_to_ptr.vmem [resolvable:$true] %s57
      %63 = dma.hbm_to_vmem [thread:$0]  %s4, 512, %s58, [#allocation8], 128, 128, 8
    $region21: #{pred_model_fused.1} parent=1 // pred_fallthru
      _
    // Predicated region
    $region22: #{pred_model_fused.1} parent=1 // pred_check
      _
    $region23: #{pred_model_fused.1} parent=1 // pred_check_branch
      %65 = sbr.rel (0) target = $region25
    $region24: #{pred_model_fused.1} parent=1 // pred_region
      _
    $region25: #{pred_model_fused.1} parent=1 // pred_fallthru
      _
    // Predicated region
    $region26: #{pred_model_fused.1} parent=1 // pred_check
      _
    $region27: #{pred_model_fused.1} parent=1 // pred_check_branch
      %67 = sbr.rel (0) target = $region29
    $region28: #{pred_model_fused.1} parent=1 // pred_region
      %s69 = ssub.s32 512, 512
      %70 = vsyncadd [#allocation8], %s69
      %s71 = sshll.u32 [#allocation9], 4
      %s72 = int_to_ptr.vmem [resolvable:$true] %s71
      %77 = dma.hbm_to_vmem [thread:$0]  %s6, 512, %s72, [#allocation8], 128, 128, 8
    $region29: #{pred_model_fused.1} parent=1 // pred_fallthru
      _
    // Predicated region
    $region30: #{pred_model_fused.1} parent=1 // pred_check
      _
    $region31: #{pred_model_fused.1} parent=1 // pred_check_branch
      %79 = sbr.rel (0) target = $region33
    $region32: #{pred_model_fused.1} parent=1 // pred_region
      _
    $region33: #{pred_model_fused.1} parent=1 // pred_fallthru
      _
    // Predicated region
    $region34: #{pred_model_fused.1} parent=1 // pred_check
      _
    $region35: #{pred_model_fused.1} parent=1 // pred_check_branch
      %81 = sbr.rel (0) target = $region37
    $region36: #{pred_model_fused.1} parent=1 // pred_region
      %82 = dma.done [#allocation3], 128
    $region37: #{pred_model_fused.1} parent=1 // pred_fallthru
      _
    // Predicated region
    $region38: #{pred_model_fused.1} parent=1 // pred_check
      _
    $region39: #{pred_model_fused.1} parent=1 // pred_check_branch
      %84 = sbr.rel (0) target = $region41
    $region40: #{pred_model_fused.1} parent=1 // pred_region
      %85 = dma.done [#allocation5], 512
    $region41: #{pred_model_fused.1} parent=1 // pred_fallthru
      _
    // Predicated region
    $region42: #{pred_model_fused.1} parent=1 // pred_check
      _
    $region43: #{pred_model_fused.1} parent=1 // pred_check_branch
      %87 = sbr.rel (0) target = $region45
    $region44: #{pred_model_fused.1} parent=1 // pred_region
      %88 = dma.done [#allocation5], 512
    $region45: #{pred_model_fused.1} parent=1 // pred_fallthru
      _
    // Predicated region
    $region46: #{pred_model_fused.1} parent=1 // pred_check
      _
    $region47: #{pred_model_fused.1} parent=1 // pred_check_branch
      %90 = sbr.rel (0) target = $region49
    $region48: #{pred_model_fused.1} parent=1 // pred_region
      %91 = dma.done [#allocation8], 512
    $region49: #{pred_model_fused.1} parent=1 // pred_fallthru
      _
    // Predicated region
    $region50: #{pred_model_fused.1} parent=1 // pred_check
      _
    $region51: #{pred_model_fused.1} parent=1 // pred_check_branch
      %93 = sbr.rel (0) target = $region53
    $region52: #{pred_model_fused.1} parent=1 // pred_region
      %94 = dma.done [#allocation8], 512
    $region53: #{pred_model_fused.1} parent=1 // pred_fallthru
      _
    %v95 = vld [vmem:[%s0] sm:$0xff]
    %v96 = vld [vmem:[#allocation2] sm:$0xff]
    %v97 = vld [vmem:[#allocation4] sm:$0xff]
    %v98 = vld [vmem:[#allocation4 + $0x8] sm:$0xff]
    %v99 = vld [vmem:[#allocation4 + $0x10] sm:$0xff]
    %v100 = vld [vmem:[#allocation4 + $0x18] sm:$0xff]
    %vm101 = vcmask 261120
    %v103 = vsel %vm101, %v95, 0
    %105 = vmatprep.subr.mxu0 0.0
    %106 = vmatpush1.msra.mxu0 %v97
    %107 = vmatprep.subr.mxu0 0.0
    %108 = vmatpush1.msra.mxu0 %v98
    %109 = vmatprep.subr.mxu0 0.0
    %110 = vmatpush1.msra.mxu0 %v99
    %111 = vmatprep.subr.mxu0 0.0
    %112 = vmatpush1.msra.mxu0 %v100
    %113 = vmatprep.subr.mxu0 0.0
    %114 = vmatpush1.msra.mxu0 0.0
    %115 = vmatprep.subr.mxu0 0.0
    %116 = vmatpush1.msra.mxu0 0.0
    %117 = vmatprep.subr.mxu0 0.0
    %118 = vmatpush1.msra.mxu0 0.0
    %119 = vmatprep.subr.mxu0 0.0
    %120 = vmatpush1.msra.mxu0 0.0
    %121 = vmatprep.subr.mxu0 0.0
    %122 = vmatpush1.msra.mxu0 0.0
    %123 = vmatprep.subr.mxu0 0.0
    %124 = vmatpush1.msra.mxu0 0.0
    %125 = vmatprep.subr.mxu0 0.0
    %126 = vmatpush1.msra.mxu0 0.0
    %127 = vmatprep.subr.mxu0 0.0
    %128 = vmatpush1.msra.mxu0 0.0
    %129 = vmatprep.subr.mxu0 0.0
    %130 = vmatpush1.msra.mxu0 0.0
    %131 = vmatprep.subr.mxu0 0.0
    %132 = vmatpush1.msra.mxu0 0.0
    %133 = vmatprep.subr.mxu0 0.0
    %134 = vmatpush1.msra.mxu0 0.0
    %135 = vmatprep.subr.mxu0 0.0
    %136 = vmatpush1.msra.mxu0 0.0
    %137 = vmatprep.subr.mxu0 0.0
    %138 = vmatpush1.msra.mxu0 0.0
    %139 = vmatprep.subr.mxu0 0.0
    %140 = vmatpush1.msra.mxu0 0.0
    %141 = vmatprep.subr.mxu0 0.0
    %142 = vmatpush1.msra.mxu0 0.0
    %143 = vmatprep.subr.mxu0 0.0
    %144 = vmatpush1.msra.mxu0 0.0
    %145 = vmatprep.subr.mxu0 0.0
    %146 = vmatpush1.msra.mxu0 0.0
    %147 = vmatprep.subr.mxu0 0.0
    %148 = vmatpush1.msra.mxu0 0.0
    %149 = vmatprep.subr.mxu0 0.0
    %150 = vmatpush1.msra.mxu0 0.0
    %151 = vmatprep.subr.mxu0 0.0
    %152 = vmatpush1.msra.mxu0 0.0
    %153 = vmatprep.subr.mxu0 0.0
    %154 = vmatpush1.msra.mxu0 0.0
    %155 = vmatprep.subr.mxu0 0.0
    %156 = vmatpush1.msra.mxu0 0.0
    %157 = vmatprep.subr.mxu0 0.0
    %158 = vmatpush1.msra.mxu0 0.0
    %159 = vmatprep.subr.mxu0 0.0
    %160 = vmatpush1.msra.mxu0 0.0
    %161 = vmatprep.subr.mxu0 0.0
    %162 = vmatpush1.msra.mxu0 0.0
    %163 = vmatprep.subr.mxu0 0.0
    %164 = vmatpush1.msra.mxu0 0.0
    %165 = vmatprep.subr.mxu0 0.0
    %166 = vmatpush1.msra.mxu0 0.0
    %167 = vmatprep.subr.mxu0 0.0
    %168 = vmatpush1.msra.mxu0 0.0
    %169 = vmatprep.mubr.f32.mxu0 0.0
    %170 = vmatmul.mubr.f32.gmra.mrb[0].mxu0 %v103
    %v171 = vpop.f32.mrb[0].mxu0
    %v172 = vadd.f32 0.0, %v171
    %v173 = vpop.f32.mrb[0].mxu0
    %174 = vdwg.mxu0
    %v175 = vld [vmem:[#allocation6] sm:$0xff]
    %v176 = vld [vmem:[#allocation6 + $0x8] sm:$0xff]
    %v177 = vld [vmem:[#allocation6 + $0x10] sm:$0xff]
    %v178 = vld [vmem:[#allocation6 + $0x18] sm:$0xff]
    %v180 = vsel %vm101, %v96, 0
    %182 = vmatprep.subr.mxu0 0.0
    %183 = vmatpush1.msra.mxu0 %v175
    %184 = vmatprep.subr.mxu0 0.0
    %185 = vmatpush1.msra.mxu0 %v176
    %186 = vmatprep.subr.mxu0 0.0
    %187 = vmatpush1.msra.mxu0 %v177
    %188 = vmatprep.subr.mxu0 0.0
    %189 = vmatpush1.msra.mxu0 %v178
    %190 = vmatprep.subr.mxu0 0.0
    %191 = vmatpush1.msra.mxu0 0.0
    %192 = vmatprep.subr.mxu0 0.0
    %193 = vmatpush1.msra.mxu0 0.0
    %194 = vmatprep.subr.mxu0 0.0
    %195 = vmatpush1.msra.mxu0 0.0
    %196 = vmatprep.subr.mxu0 0.0
    %197 = vmatpush1.msra.mxu0 0.0
    %198 = vmatprep.subr.mxu0 0.0
    %199 = vmatpush1.msra.mxu0 0.0
    %200 = vmatprep.subr.mxu0 0.0
    %201 = vmatpush1.msra.mxu0 0.0
    %202 = vmatprep.subr.mxu0 0.0
    %203 = vmatpush1.msra.mxu0 0.0
    %204 = vmatprep.subr.mxu0 0.0
    %205 = vmatpush1.msra.mxu0 0.0
    %206 = vmatprep.subr.mxu0 0.0
    %207 = vmatpush1.msra.mxu0 0.0
    %208 = vmatprep.subr.mxu0 0.0
    %209 = vmatpush1.msra.mxu0 0.0
    %210 = vmatprep.subr.mxu0 0.0
    %211 = vmatpush1.msra.mxu0 0.0
    %212 = vmatprep.subr.mxu0 0.0
    %213 = vmatpush1.msra.mxu0 0.0
    %214 = vmatprep.subr.mxu0 0.0
    %215 = vmatpush1.msra.mxu0 0.0
    %216 = vmatprep.subr.mxu0 0.0
    %217 = vmatpush1.msra.mxu0 0.0
    %218 = vmatprep.subr.mxu0 0.0
    %219 = vmatpush1.msra.mxu0 0.0
    %220 = vmatprep.subr.mxu0 0.0
    %221 = vmatpush1.msra.mxu0 0.0
    %222 = vmatprep.subr.mxu0 0.0
    %223 = vmatpush1.msra.mxu0 0.0
    %224 = vmatprep.subr.mxu0 0.0
    %225 = vmatpush1.msra.mxu0 0.0
    %226 = vmatprep.subr.mxu0 0.0
    %227 = vmatpush1.msra.mxu0 0.0
    %228 = vmatprep.subr.mxu0 0.0
    %229 = vmatpush1.msra.mxu0 0.0
    %230 = vmatprep.subr.mxu0 0.0
    %231 = vmatpush1.msra.mxu0 0.0
    %232 = vmatprep.subr.mxu0 0.0
    %233 = vmatpush1.msra.mxu0 0.0
    %234 = vmatprep.subr.mxu0 0.0
    %235 = vmatpush1.msra.mxu0 0.0
    %236 = vmatprep.subr.mxu0 0.0
    %237 = vmatpush1.msra.mxu0 0.0
    %238 = vmatprep.subr.mxu0 0.0
    %239 = vmatpush1.msra.mxu0 0.0
    %240 = vmatprep.subr.mxu0 0.0
    %241 = vmatpush1.msra.mxu0 0.0
    %242 = vmatprep.subr.mxu0 0.0
    %243 = vmatpush1.msra.mxu0 0.0
    %244 = vmatprep.subr.mxu0 0.0
    %245 = vmatpush1.msra.mxu0 0.0
    %246 = vmatprep.mubr.f32.mxu0 0.0
    %247 = vmatmul.mubr.f32.gmra.mrb[0].mxu0 %v180
    %v248 = vpop.f32.mrb[0].mxu0
    %v249 = vadd.f32 0.0, %v248
    %v250 = vpop.f32.mrb[0].mxu0
    %251 = vdwg.mxu0
    %v252 = vld [vmem:[%s5] sm:$0x1]
    %254 = vrot.lane.b32.xlu0 %v249, 96
    %v255 = vpop.permute.xlu0 %254
    %v257 = vadd.f32 %v172, %v255
    %v259 = vlaneseq
    %v260 = vshrl.u32 %v259, 7
    %v261 = vsub.s32 0, %v260
    %v262 = vrot.slane %v252, %v261
    %263 = vrot.lane.b32.xlu0 %v262, 64
    %v264 = vpop.permute.xlu0 %263
    %v266 = vadd.f32 %v257, %v264
    %v267 = vmax.f32 %v266, 0.0
    %v268 = vld [vmem:[#allocation9] sm:$0xff]
    %v269 = vld [vmem:[#allocation9 + $0x8] sm:$0xff]
    %v270 = vld [vmem:[#allocation9 + $0x10] sm:$0xff]
    %v271 = vld [vmem:[#allocation9 + $0x18] sm:$0xff]
    %v272 = vld [vmem:[%s7] sm:$0x1]
    %v274 = vlaneseq
    %v275 = vshrl.u32 %v274, 7
    %v276 = vsub.s32 0, %v275
    %v277 = vrot.slane %v272, %v276
    %280 = vrot.lane.b32.xlu0 %v267, 64
    %v281 = vpop.permute.xlu0 %280
    %v282 = vsel %vm101, %v281, 0
    %284 = vmatprep.subr.mxu0 0.0
    %285 = vmatpush1.msra.mxu0 %v268
    %286 = vmatprep.subr.mxu0 0.0
    %287 = vmatpush1.msra.mxu0 %v269
    %288 = vmatprep.subr.mxu0 0.0
    %289 = vmatpush1.msra.mxu0 %v270
    %290 = vmatprep.subr.mxu0 0.0
    %291 = vmatpush1.msra.mxu0 %v271
    %292 = vmatprep.subr.mxu0 0.0
    %293 = vmatpush1.msra.mxu0 0.0
    %294 = vmatprep.subr.mxu0 0.0
    %295 = vmatpush1.msra.mxu0 0.0
    %296 = vmatprep.subr.mxu0 0.0
    %297 = vmatpush1.msra.mxu0 0.0
    %298 = vmatprep.subr.mxu0 0.0
    %299 = vmatpush1.msra.mxu0 0.0
    %300 = vmatprep.subr.mxu0 0.0
    %301 = vmatpush1.msra.mxu0 0.0
    %302 = vmatprep.subr.mxu0 0.0
    %303 = vmatpush1.msra.mxu0 0.0
    %304 = vmatprep.subr.mxu0 0.0
    %305 = vmatpush1.msra.mxu0 0.0
    %306 = vmatprep.subr.mxu0 0.0
    %307 = vmatpush1.msra.mxu0 0.0
    %308 = vmatprep.subr.mxu0 0.0
    %309 = vmatpush1.msra.mxu0 0.0
    %310 = vmatprep.subr.mxu0 0.0
    %311 = vmatpush1.msra.mxu0 0.0
    %312 = vmatprep.subr.mxu0 0.0
    %313 = vmatpush1.msra.mxu0 0.0
    %314 = vmatprep.subr.mxu0 0.0
    %315 = vmatpush1.msra.mxu0 0.0
    %316 = vmatprep.subr.mxu0 0.0
    %317 = vmatpush1.msra.mxu0 0.0
    %318 = vmatprep.subr.mxu0 0.0
    %319 = vmatpush1.msra.mxu0 0.0
    %320 = vmatprep.subr.mxu0 0.0
    %321 = vmatpush1.msra.mxu0 0.0
    %322 = vmatprep.subr.mxu0 0.0
    %323 = vmatpush1.msra.mxu0 0.0
    %324 = vmatprep.subr.mxu0 0.0
    %325 = vmatpush1.msra.mxu0 0.0
    %326 = vmatprep.subr.mxu0 0.0
    %327 = vmatpush1.msra.mxu0 0.0
    %328 = vmatprep.subr.mxu0 0.0
    %329 = vmatpush1.msra.mxu0 0.0
    %330 = vmatprep.subr.mxu0 0.0
    %331 = vmatpush1.msra.mxu0 0.0
    %332 = vmatprep.subr.mxu0 0.0
    %333 = vmatpush1.msra.mxu0 0.0
    %334 = vmatprep.subr.mxu0 0.0
    %335 = vmatpush1.msra.mxu0 0.0
    %336 = vmatprep.subr.mxu0 0.0
    %337 = vmatpush1.msra.mxu0 0.0
    %338 = vmatprep.subr.mxu0 0.0
    %339 = vmatpush1.msra.mxu0 0.0
    %340 = vmatprep.subr.mxu0 0.0
    %341 = vmatpush1.msra.mxu0 0.0
    %342 = vmatprep.subr.mxu0 0.0
    %343 = vmatpush1.msra.mxu0 0.0
    %344 = vmatprep.subr.mxu0 0.0
    %345 = vmatpush1.msra.mxu0 0.0
    %346 = vmatprep.subr.mxu0 0.0
    %347 = vmatpush1.msra.mxu0 0.0
    %348 = vmatprep.mubr.f32.mxu0 0.0
    %349 = vmatmul.mubr.f32.gmra.mrb[0].mxu0 %v282
    %v350 = vpop.f32.mrb[0].mxu0
    %v351 = vadd.f32 %v277, %v350
    %v352 = vpop.f32.mrb[0].mxu0
    %353 = vdwg.mxu0
    %v354 = vld [vmem:[#allocation7] sm:$0xff]
    %v355 = vld [vmem:[#allocation7 + $0x8] sm:$0xff]
    %v356 = vld [vmem:[#allocation7 + $0x10] sm:$0xff]
    %v357 = vld [vmem:[#allocation7 + $0x18] sm:$0xff]
    %v358 = vmul.f32 %v249, %v172
    %vm359 = vcmask 64512
    %v360 = vsel %vm359, %v358, 0.0
    %361 = vadd.xlane.f32.xlu0 %v360
    %v362 = vpop.xlane.xlu0 %361
    %364 = vrot.lane.b32.xlu0 %v172, 120
    %v365 = vpop.permute.xlu0 %364
    %v367 = vmul.f32 %v249, %v365
    %v368 = vsel %vm359, %v367, 0.0
    %369 = vadd.xlane.f32.xlu0 %v368
    %v370 = vpop.xlane.xlu0 %369
    %371 = vrot.lane.b32.xlu0 %v172, 112
    %v372 = vpop.permute.xlu0 %371
    %v374 = vmul.f32 %v249, %v372
    %v375 = vsel %vm359, %v374, 0.0
    %376 = vadd.xlane.f32.xlu0 %v375
    %v377 = vpop.xlane.xlu0 %376
    %378 = vrot.lane.b32.xlu0 %v172, 104
    %v379 = vpop.permute.xlu0 %378
    %v381 = vmul.f32 %v249, %v379
    %v382 = vsel %vm359, %v381, 0.0
    %383 = vadd.xlane.f32.xlu0 %v382
    %v384 = vpop.xlane.xlu0 %383
    %vm385 = vcmask 7168
    %v386 = vsel %vm385, %v362, %v370
    %vm387 = vcmask 15360
    %v388 = vsel %vm387, %v386, %v377
    %vm389 = vcmask 23552
    %v390 = vsel %vm389, %v388, %v384
    %vm391 = vcmask 31744
    %v392 = vsel %vm391, %v390, -inf
    %393 = vmax.xlane.f32.xlu0 %v392
    %v394 = vpop.xlane.xlu0 %393
    %v395 = vsub.f32 %v390, %v394
    %v396 = vmul.f32 %v395, 1.442695
    %v397 = vpow.pop %v396
    %v398 = vsel %vm391, %v397, 0.0
    %399 = vadd.xlane.f32.xlu0 %v398
    %v400 = vpop.xlane.xlu0 %399
    %v401 = vrcp.pop %v400
    %v402 = vmul.f32 %v397, %v401
    %404 = vset.pattern.permute.xlu0 0
    %405 = vperm.xlu0 %404, %v402
    %v406 = vpop.permute.xlu0 %405
    %v408 = vmul.f32 %v406, %v172
    %409 = vset.pattern.permute.xlu0 1
    %410 = vperm.xlu0 %409, %v402
    %v411 = vpop.permute.xlu0 %410
    %v413 = vmul.f32 %v411, %v172
    %415 = vrot.lane.b32.xlu0 %v413, 120
    %v416 = vpop.permute.xlu0 %415
    %v418 = vadd.f32 %v408, %v416
    %419 = vset.pattern.permute.xlu0 2
    %420 = vperm.xlu0 %419, %v402
    %v421 = vpop.permute.xlu0 %420
    %v423 = vmul.f32 %v421, %v172
    %425 = vrot.lane.b32.xlu0 %v423, 112
    %v426 = vpop.permute.xlu0 %425
    %v428 = vadd.f32 %v418, %v426
    %429 = vset.pattern.permute.xlu0 3
    %430 = vperm.xlu0 %429, %v402
    %v431 = vpop.permute.xlu0 %430
    %v433 = vmul.f32 %v431, %v172
    %435 = vrot.lane.b32.xlu0 %v433, 104
    %v436 = vpop.permute.xlu0 %435
    %v438 = vadd.f32 %v428, %v436
    %439 = vrot.lane.b32.xlu0 %v172, 8
    %v440 = vpop.permute.xlu0 %439
    %v442 = vmul.f32 %v249, %v440
    %444 = vrot.lane.b32.xlu0 %v442, 120
    %v445 = vpop.permute.xlu0 %444
    %v447 = vsel %vm359, %v445, 0.0
    %448 = vadd.xlane.f32.xlu0 %v447
    %v449 = vpop.xlane.xlu0 %448
    %451 = vrot.lane.b32.xlu0 %v358, 120
    %v452 = vpop.permute.xlu0 %451
    %v454 = vsel %vm359, %v452, 0.0
    %455 = vadd.xlane.f32.xlu0 %v454
    %v456 = vpop.xlane.xlu0 %455
    %458 = vrot.lane.b32.xlu0 %v367, 120
    %v459 = vpop.permute.xlu0 %458
    %v461 = vsel %vm359, %v459, 0.0
    %462 = vadd.xlane.f32.xlu0 %v461
    %v463 = vpop.xlane.xlu0 %462
    %465 = vrot.lane.b32.xlu0 %v374, 120
    %v466 = vpop.permute.xlu0 %465
    %v468 = vsel %vm359, %v466, 0.0
    %469 = vadd.xlane.f32.xlu0 %v468
    %v470 = vpop.xlane.xlu0 %469
    %v471 = vsel %vm385, %v449, %v456
    %v472 = vsel %vm387, %v471, %v463
    %v473 = vsel %vm389, %v472, %v470
    %v474 = vsel %vm391, %v473, -inf
    %475 = vmax.xlane.f32.xlu0 %v474
    %v476 = vpop.xlane.xlu0 %475
    %v477 = vsub.f32 %v473, %v476
    %v478 = vmul.f32 %v477, 1.442695
    %v479 = vpow.pop %v478
    %v480 = vsel %vm391, %v479, 0.0
    %481 = vadd.xlane.f32.xlu0 %v480
    %v482 = vpop.xlane.xlu0 %481
    %v483 = vrcp.pop %v482
    %v484 = vmul.f32 %v479, %v483
    %486 = vset.pattern.permute.xlu0 0
    %487 = vperm.xlu0 %486, %v484
    %v488 = vpop.permute.xlu0 %487
    %v490 = vmul.f32 %v488, %v172
    %491 = vset.pattern.permute.xlu0 1
    %492 = vperm.xlu0 %491, %v484
    %v493 = vpop.permute.xlu0 %492
    %v495 = vmul.f32 %v493, %v172
    %497 = vrot.lane.b32.xlu0 %v495, 120
    %v498 = vpop.permute.xlu0 %497
    %v500 = vadd.f32 %v490, %v498
    %501 = vset.pattern.permute.xlu0 2
    %502 = vperm.xlu0 %501, %v484
    %v503 = vpop.permute.xlu0 %502
    %v505 = vmul.f32 %v503, %v172
    %507 = vrot.lane.b32.xlu0 %v505, 112
    %v508 = vpop.permute.xlu0 %507
    %v510 = vadd.f32 %v500, %v508
    %511 = vset.pattern.permute.xlu0 3
    %512 = vperm.xlu0 %511, %v484
    %v513 = vpop.permute.xlu0 %512
    %v515 = vmul.f32 %v513, %v172
    %517 = vrot.lane.b32.xlu0 %v515, 104
    %v518 = vpop.permute.xlu0 %517
    %v520 = vadd.f32 %v510, %v518
    %521 = vrot.lane.b32.xlu0 %v172, 16
    %v522 = vpop.permute.xlu0 %521
    %v524 = vmul.f32 %v249, %v522
    %526 = vrot.lane.b32.xlu0 %v524, 112
    %v527 = vpop.permute.xlu0 %526
    %v529 = vsel %vm359, %v527, 0.0
    %530 = vadd.xlane.f32.xlu0 %v529
    %v531 = vpop.xlane.xlu0 %530
    %532 = vrot.lane.b32.xlu0 %v442, 112
    %v533 = vpop.permute.xlu0 %532
    %v535 = vsel %vm359, %v533, 0.0
    %536 = vadd.xlane.f32.xlu0 %v535
    %v537 = vpop.xlane.xlu0 %536
    %538 = vrot.lane.b32.xlu0 %v358, 112
    %v539 = vpop.permute.xlu0 %538
    %v541 = vsel %vm359, %v539, 0.0
    %542 = vadd.xlane.f32.xlu0 %v541
    %v543 = vpop.xlane.xlu0 %542
    %544 = vrot.lane.b32.xlu0 %v367, 112
    %v545 = vpop.permute.xlu0 %544
    %v547 = vsel %vm359, %v545, 0.0
    %548 = vadd.xlane.f32.xlu0 %v547
    %v549 = vpop.xlane.xlu0 %548
    %v550 = vsel %vm385, %v531, %v537
    %v551 = vsel %vm387, %v550, %v543
    %v552 = vsel %vm389, %v551, %v549
    %v553 = vsel %vm391, %v552, -inf
    %554 = vmax.xlane.f32.xlu0 %v553
    %v555 = vpop.xlane.xlu0 %554
    %v556 = vsub.f32 %v552, %v555
    %v557 = vmul.f32 %v556, 1.442695
    %v558 = vpow.pop %v557
    %v559 = vsel %vm391, %v558, 0.0
    %560 = vadd.xlane.f32.xlu0 %v559
    %v561 = vpop.xlane.xlu0 %560
    %v562 = vrcp.pop %v561
    %v563 = vmul.f32 %v558, %v562
    %565 = vset.pattern.permute.xlu0 0
    %566 = vperm.xlu0 %565, %v563
    %v567 = vpop.permute.xlu0 %566
    %v569 = vmul.f32 %v567, %v172
    %570 = vset.pattern.permute.xlu0 1
    %571 = vperm.xlu0 %570, %v563
    %v572 = vpop.permute.xlu0 %571
    %v574 = vmul.f32 %v572, %v172
    %576 = vrot.lane.b32.xlu0 %v574, 120
    %v577 = vpop.permute.xlu0 %576
    %v579 = vadd.f32 %v569, %v577
    %580 = vset.pattern.permute.xlu0 2
    %581 = vperm.xlu0 %580, %v563
    %v582 = vpop.permute.xlu0 %581
    %v584 = vmul.f32 %v582, %v172
    %586 = vrot.lane.b32.xlu0 %v584, 112
    %v587 = vpop.permute.xlu0 %586
    %v589 = vadd.f32 %v579, %v587
    %590 = vset.pattern.permute.xlu0 3
    %591 = vperm.xlu0 %590, %v563
    %v592 = vpop.permute.xlu0 %591
    %v594 = vmul.f32 %v592, %v172
    %596 = vrot.lane.b32.xlu0 %v594, 104
    %v597 = vpop.permute.xlu0 %596
    %v599 = vadd.f32 %v589, %v597
    %600 = vrot.lane.b32.xlu0 %v172, 24
    %v601 = vpop.permute.xlu0 %600
    %v603 = vmul.f32 %v249, %v601
    %605 = vrot.lane.b32.xlu0 %v603, 104
    %v606 = vpop.permute.xlu0 %605
    %v608 = vsel %vm359, %v606, 0.0
    %609 = vadd.xlane.f32.xlu0 %v608
    %v610 = vpop.xlane.xlu0 %609
    %611 = vrot.lane.b32.xlu0 %v524, 104
    %v612 = vpop.permute.xlu0 %611
    %v614 = vsel %vm359, %v612, 0.0
    %615 = vadd.xlane.f32.xlu0 %v614
    %v616 = vpop.xlane.xlu0 %615
    %617 = vrot.lane.b32.xlu0 %v442, 104
    %v618 = vpop.permute.xlu0 %617
    %v620 = vsel %vm359, %v618, 0.0
    %621 = vadd.xlane.f32.xlu0 %v620
    %v622 = vpop.xlane.xlu0 %621
    %623 = vrot.lane.b32.xlu0 %v358, 104
    %v624 = vpop.permute.xlu0 %623
    %v626 = vsel %vm359, %v624, 0.0
    %627 = vadd.xlane.f32.xlu0 %v626
    %v628 = vpop.xlane.xlu0 %627
    %v629 = vsel %vm385, %v610, %v616
    %v630 = vsel %vm387, %v629, %v622
    %v631 = vsel %vm389, %v630, %v628
    %v632 = vsel %vm391, %v631, -inf
    %633 = vmax.xlane.f32.xlu0 %v632
    %v634 = vpop.xlane.xlu0 %633
    %v635 = vsub.f32 %v631, %v634
    %v636 = vmul.f32 %v635, 1.442695
    %v637 = vpow.pop %v636
    %v638 = vsel %vm391, %v637, 0.0
    %639 = vadd.xlane.f32.xlu0 %v638
    %v640 = vpop.xlane.xlu0 %639
    %v641 = vrcp.pop %v640
    %v642 = vmul.f32 %v637, %v641
    %644 = vset.pattern.permute.xlu0 0
    %645 = vperm.xlu0 %644, %v642
    %v646 = vpop.permute.xlu0 %645
    %v648 = vmul.f32 %v646, %v172
    %649 = vset.pattern.permute.xlu0 1
    %650 = vperm.xlu0 %649, %v642
    %v651 = vpop.permute.xlu0 %650
    %v653 = vmul.f32 %v651, %v172
    %655 = vrot.lane.b32.xlu0 %v653, 120
    %v656 = vpop.permute.xlu0 %655
    %v658 = vadd.f32 %v648, %v656
    %659 = vset.pattern.permute.xlu0 2
    %660 = vperm.xlu0 %659, %v642
    %v661 = vpop.permute.xlu0 %660
    %v663 = vmul.f32 %v661, %v172
    %665 = vrot.lane.b32.xlu0 %v663, 112
    %v666 = vpop.permute.xlu0 %665
    %v668 = vadd.f32 %v658, %v666
    %669 = vset.pattern.permute.xlu0 3
    %670 = vperm.xlu0 %669, %v642
    %v671 = vpop.permute.xlu0 %670
    %v673 = vmul.f32 %v671, %v172
    %675 = vrot.lane.b32.xlu0 %v673, 104
    %v676 = vpop.permute.xlu0 %675
    %v678 = vadd.f32 %v668, %v676
    %680 = vrot.lane.b32.xlu0 %v438, 96
    %v681 = vpop.permute.xlu0 %680
    %684 = vrot.lane.b32.xlu0 %v520, 104
    %v685 = vpop.permute.xlu0 %684
    %688 = vrot.lane.b32.xlu0 %v599, 112
    %v689 = vpop.permute.xlu0 %688
    %692 = vrot.lane.b32.xlu0 %v678, 120
    %v693 = vpop.permute.xlu0 %692
    %v695 = vsel %vm359, %v681, %v685
    %vm696 = vcmask 130048
    %v697 = vsel %vm696, %v695, %v689
    %vm698 = vcmask 195584
    %v699 = vsel %vm698, %v697, %v693
    %700 = vrot.lane.b32.xlu0 %v262, 96
    %v701 = vpop.permute.xlu0 %700
    %v704 = vsel %vm101, %v699, 0
    %706 = vmatprep.subr.mxu0 0.0
    %707 = vmatpush1.msra.mxu0 %v354
    %708 = vmatprep.subr.mxu0 0.0
    %709 = vmatpush1.msra.mxu0 %v355
    %710 = vmatprep.subr.mxu0 0.0
    %711 = vmatpush1.msra.mxu0 %v356
    %712 = vmatprep.subr.mxu0 0.0
    %713 = vmatpush1.msra.mxu0 %v357
    %714 = vmatprep.subr.mxu0 0.0
    %715 = vmatpush1.msra.mxu0 0.0
    %716 = vmatprep.subr.mxu0 0.0
    %717 = vmatpush1.msra.mxu0 0.0
    %718 = vmatprep.subr.mxu0 0.0
    %719 = vmatpush1.msra.mxu0 0.0
    %720 = vmatprep.subr.mxu0 0.0
    %721 = vmatpush1.msra.mxu0 0.0
    %722 = vmatprep.subr.mxu0 0.0
    %723 = vmatpush1.msra.mxu0 0.0
    %724 = vmatprep.subr.mxu0 0.0
    %725 = vmatpush1.msra.mxu0 0.0
    %726 = vmatprep.subr.mxu0 0.0
    %727 = vmatpush1.msra.mxu0 0.0
    %728 = vmatprep.subr.mxu0 0.0
    %729 = vmatpush1.msra.mxu0 0.0
    %730 = vmatprep.subr.mxu0 0.0
    %731 = vmatpush1.msra.mxu0 0.0
    %732 = vmatprep.subr.mxu0 0.0
    %733 = vmatpush1.msra.mxu0 0.0
    %734 = vmatprep.subr.mxu0 0.0
    %735 = vmatpush1.msra.mxu0 0.0
    %736 = vmatprep.subr.mxu0 0.0
    %737 = vmatpush1.msra.mxu0 0.0
    %738 = vmatprep.subr.mxu0 0.0
    %739 = vmatpush1.msra.mxu0 0.0
    %740 = vmatprep.subr.mxu0 0.0
    %741 = vmatpush1.msra.mxu0 0.0
    %742 = vmatprep.subr.mxu0 0.0
    %743 = vmatpush1.msra.mxu0 0.0
    %744 = vmatprep.subr.mxu0 0.0
    %745 = vmatpush1.msra.mxu0 0.0
    %746 = vmatprep.subr.mxu0 0.0
    %747 = vmatpush1.msra.mxu0 0.0
    %748 = vmatprep.subr.mxu0 0.0
    %749 = vmatpush1.msra.mxu0 0.0
    %750 = vmatprep.subr.mxu0 0.0
    %751 = vmatpush1.msra.mxu0 0.0
    %752 = vmatprep.subr.mxu0 0.0
    %753 = vmatpush1.msra.mxu0 0.0
    %754 = vmatprep.subr.mxu0 0.0
    %755 = vmatpush1.msra.mxu0 0.0
    %756 = vmatprep.subr.mxu0 0.0
    %757 = vmatpush1.msra.mxu0 0.0
    %758 = vmatprep.subr.mxu0 0.0
    %759 = vmatpush1.msra.mxu0 0.0
    %760 = vmatprep.subr.mxu0 0.0
    %761 = vmatpush1.msra.mxu0 0.0
    %762 = vmatprep.subr.mxu0 0.0
    %763 = vmatpush1.msra.mxu0 0.0
    %764 = vmatprep.subr.mxu0 0.0
    %765 = vmatpush1.msra.mxu0 0.0
    %766 = vmatprep.subr.mxu0 0.0
    %767 = vmatpush1.msra.mxu0 0.0
    %768 = vmatprep.subr.mxu0 0.0
    %769 = vmatpush1.msra.mxu0 0.0
    %770 = vmatprep.mubr.f32.mxu0 0.0
    %771 = vmatmul.mubr.f32.gmra.mrb[0].mxu0 %v704
    %v772 = vpop.f32.mrb[0].mxu0
    %v773 = vadd.f32 %v701, %v772
    %v774 = vpop.f32.mrb[0].mxu0
    %775 = vdwg.mxu0
    %780 = vrot.lane.b32.xlu0 %v354, 96
    %v781 = vpop.permute.xlu0 %780
    %782 = vrot.lane.b32.xlu0 %v355, 96
    %v783 = vpop.permute.xlu0 %782
    %784 = vrot.lane.b32.xlu0 %v356, 96
    %v785 = vpop.permute.xlu0 %784
    %786 = vrot.lane.b32.xlu0 %v357, 96
    %v787 = vpop.permute.xlu0 %786
    %v793 = vsel %vm101, %v773, 0
    %795 = vmatprep.subr.mxu0 0.0
    %796 = vmatpush1.msra.mxu0 %v781
    %797 = vmatprep.subr.mxu0 0.0
    %798 = vmatpush1.msra.mxu0 %v783
    %799 = vmatprep.subr.mxu0 0.0
    %800 = vmatpush1.msra.mxu0 %v785
    %801 = vmatprep.subr.mxu0 0.0
    %802 = vmatpush1.msra.mxu0 %v787
    %803 = vmatprep.subr.mxu0 0.0
    %804 = vmatpush1.msra.mxu0 0.0
    %805 = vmatprep.subr.mxu0 0.0
    %806 = vmatpush1.msra.mxu0 0.0
    %807 = vmatprep.subr.mxu0 0.0
    %808 = vmatpush1.msra.mxu0 0.0
    %809 = vmatprep.subr.mxu0 0.0
    %810 = vmatpush1.msra.mxu0 0.0
    %811 = vmatprep.subr.mxu0 0.0
    %812 = vmatpush1.msra.mxu0 0.0
    %813 = vmatprep.subr.mxu0 0.0
    %814 = vmatpush1.msra.mxu0 0.0
    %815 = vmatprep.subr.mxu0 0.0
    %816 = vmatpush1.msra.mxu0 0.0
    %817 = vmatprep.subr.mxu0 0.0
    %818 = vmatpush1.msra.mxu0 0.0
    %819 = vmatprep.subr.mxu0 0.0
    %820 = vmatpush1.msra.mxu0 0.0
    %821 = vmatprep.subr.mxu0 0.0
    %822 = vmatpush1.msra.mxu0 0.0
    %823 = vmatprep.subr.mxu0 0.0
    %824 = vmatpush1.msra.mxu0 0.0
    %825 = vmatprep.subr.mxu0 0.0
    %826 = vmatpush1.msra.mxu0 0.0
    %827 = vmatprep.subr.mxu0 0.0
    %828 = vmatpush1.msra.mxu0 0.0
    %829 = vmatprep.subr.mxu0 0.0
    %830 = vmatpush1.msra.mxu0 0.0
    %831 = vmatprep.subr.mxu0 0.0
    %832 = vmatpush1.msra.mxu0 0.0
    %833 = vmatprep.subr.mxu0 0.0
    %834 = vmatpush1.msra.mxu0 0.0
    %835 = vmatprep.subr.mxu0 0.0
    %836 = vmatpush1.msra.mxu0 0.0
    %837 = vmatprep.subr.mxu0 0.0
    %838 = vmatpush1.msra.mxu0 0.0
    %839 = vmatprep.subr.mxu0 0.0
    %840 = vmatpush1.msra.mxu0 0.0
    %841 = vmatprep.subr.mxu0 0.0
    %842 = vmatpush1.msra.mxu0 0.0
    %843 = vmatprep.subr.mxu0 0.0
    %844 = vmatpush1.msra.mxu0 0.0
    %845 = vmatprep.subr.mxu0 0.0
    %846 = vmatpush1.msra.mxu0 0.0
    %847 = vmatprep.subr.mxu0 0.0
    %848 = vmatpush1.msra.mxu0 0.0
    %849 = vmatprep.subr.mxu0 0.0
    %850 = vmatpush1.msra.mxu0 0.0
    %851 = vmatprep.subr.mxu0 0.0
    %852 = vmatpush1.msra.mxu0 0.0
    %853 = vmatprep.subr.mxu0 0.0
    %854 = vmatpush1.msra.mxu0 0.0
    %855 = vmatprep.subr.mxu0 0.0
    %856 = vmatpush1.msra.mxu0 0.0
    %857 = vmatprep.subr.mxu0 0.0
    %858 = vmatpush1.msra.mxu0 0.0
    %859 = vmatprep.mubr.f32.mxu0 0.0
    %860 = vmatmul.mubr.f32.gmra.mrb[0].mxu0 %v793
    %v861 = vpop.f32.mrb[0].mxu0
    %v862 = vadd.f32 0.0, %v861
    %v863 = vpop.f32.mrb[0].mxu0
    %864 = vdwg.mxu0
    %v865 = vmul.f32 %v862, %v255
    %v866 = vsel %vm359, %v865, 0.0
    %867 = vadd.xlane.f32.xlu0 %v866
    %v868 = vpop.xlane.xlu0 %867
    %869 = vrot.lane.b32.xlu0 %v249, 88
    %v870 = vpop.permute.xlu0 %869
    %v872 = vmul.f32 %v862, %v870
    %v873 = vsel %vm359, %v872, 0.0
    %874 = vadd.xlane.f32.xlu0 %v873
    %v875 = vpop.xlane.xlu0 %874
    %876 = vrot.lane.b32.xlu0 %v249, 80
    %v877 = vpop.permute.xlu0 %876
    %v879 = vmul.f32 %v862, %v877
    %v880 = vsel %vm359, %v879, 0.0
    %881 = vadd.xlane.f32.xlu0 %v880
    %v882 = vpop.xlane.xlu0 %881
    %883 = vrot.lane.b32.xlu0 %v249, 72
    %v884 = vpop.permute.xlu0 %883
    %v886 = vmul.f32 %v862, %v884
    %v887 = vsel %vm359, %v886, 0.0
    %888 = vadd.xlane.f32.xlu0 %v887
    %v889 = vpop.xlane.xlu0 %888
    %v890 = vsel %vm385, %v868, %v875
    %v891 = vsel %vm387, %v890, %v882
    %v892 = vsel %vm389, %v891, %v889
    %v893 = vsel %vm391, %v892, -inf
    %894 = vmax.xlane.f32.xlu0 %v893
    %v895 = vpop.xlane.xlu0 %894
    %v896 = vsub.f32 %v892, %v895
    %v897 = vmul.f32 %v896, 1.442695
    %v898 = vpow.pop %v897
    %v899 = vsel %vm391, %v898, 0.0
    %900 = vadd.xlane.f32.xlu0 %v899
    %v901 = vpop.xlane.xlu0 %900
    %v902 = vrcp.pop %v901
    %v903 = vmul.f32 %v898, %v902
    %905 = vset.pattern.permute.xlu0 0
    %906 = vperm.xlu0 %905, %v903
    %v907 = vpop.permute.xlu0 %906
    %v909 = vmul.f32 %v907, %v249
    %910 = vset.pattern.permute.xlu0 1
    %911 = vperm.xlu0 %910, %v903
    %v912 = vpop.permute.xlu0 %911
    %v914 = vmul.f32 %v912, %v249
    %916 = vrot.lane.b32.xlu0 %v914, 120
    %v917 = vpop.permute.xlu0 %916
    %v919 = vadd.f32 %v909, %v917
    %920 = vset.pattern.permute.xlu0 2
    %921 = vperm.xlu0 %920, %v903
    %v922 = vpop.permute.xlu0 %921
    %v924 = vmul.f32 %v922, %v249
    %926 = vrot.lane.b32.xlu0 %v924, 112
    %v927 = vpop.permute.xlu0 %926
    %v929 = vadd.f32 %v919, %v927
    %930 = vset.pattern.permute.xlu0 3
    %931 = vperm.xlu0 %930, %v903
    %v932 = vpop.permute.xlu0 %931
    %v934 = vmul.f32 %v932, %v249
    %936 = vrot.lane.b32.xlu0 %v934, 104
    %v937 = vpop.permute.xlu0 %936
    %v939 = vadd.f32 %v929, %v937
    %940 = vrot.lane.b32.xlu0 %v249, 104
    %v941 = vpop.permute.xlu0 %940
    %v943 = vmul.f32 %v862, %v941
    %945 = vrot.lane.b32.xlu0 %v943, 120
    %v946 = vpop.permute.xlu0 %945
    %v948 = vsel %vm359, %v946, 0.0
    %949 = vadd.xlane.f32.xlu0 %v948
    %v950 = vpop.xlane.xlu0 %949
    %952 = vrot.lane.b32.xlu0 %v865, 120
    %v953 = vpop.permute.xlu0 %952
    %v955 = vsel %vm359, %v953, 0.0
    %956 = vadd.xlane.f32.xlu0 %v955
    %v957 = vpop.xlane.xlu0 %956
    %959 = vrot.lane.b32.xlu0 %v872, 120
    %v960 = vpop.permute.xlu0 %959
    %v962 = vsel %vm359, %v960, 0.0
    %963 = vadd.xlane.f32.xlu0 %v962
    %v964 = vpop.xlane.xlu0 %963
    %966 = vrot.lane.b32.xlu0 %v879, 120
    %v967 = vpop.permute.xlu0 %966
    %v969 = vsel %vm359, %v967, 0.0
    %970 = vadd.xlane.f32.xlu0 %v969
    %v971 = vpop.xlane.xlu0 %970
    %v972 = vsel %vm385, %v950, %v957
    %v973 = vsel %vm387, %v972, %v964
    %v974 = vsel %vm389, %v973, %v971
    %v975 = vsel %vm391, %v974, -inf
    %976 = vmax.xlane.f32.xlu0 %v975
    %v977 = vpop.xlane.xlu0 %976
    %v978 = vsub.f32 %v974, %v977
    %v979 = vmul.f32 %v978, 1.442695
    %v980 = vpow.pop %v979
    %v981 = vsel %vm391, %v980, 0.0
    %982 = vadd.xlane.f32.xlu0 %v981
    %v983 = vpop.xlane.xlu0 %982
    %v984 = vrcp.pop %v983
    %v985 = vmul.f32 %v980, %v984
    %987 = vset.pattern.permute.xlu0 0
    %988 = vperm.xlu0 %987, %v985
    %v989 = vpop.permute.xlu0 %988
    %v991 = vmul.f32 %v989, %v249
    %992 = vset.pattern.permute.xlu0 1
    %993 = vperm.xlu0 %992, %v985
    %v994 = vpop.permute.xlu0 %993
    %v996 = vmul.f32 %v994, %v249
    %998 = vrot.lane.b32.xlu0 %v996, 120
    %v999 = vpop.permute.xlu0 %998
    %v1001 = vadd.f32 %v991, %v999
    %1002 = vset.pattern.permute.xlu0 2
    %1003 = vperm.xlu0 %1002, %v985
    %v1004 = vpop.permute.xlu0 %1003
    %v1006 = vmul.f32 %v1004, %v249
    %1008 = vrot.lane.b32.xlu0 %v1006, 112
    %v1009 = vpop.permute.xlu0 %1008
    %v1011 = vadd.f32 %v1001, %v1009
    %1012 = vset.pattern.permute.xlu0 3
    %1013 = vperm.xlu0 %1012, %v985
    %v1014 = vpop.permute.xlu0 %1013
    %v1016 = vmul.f32 %v1014, %v249
    %1018 = vrot.lane.b32.xlu0 %v1016, 104
    %v1019 = vpop.permute.xlu0 %1018
    %v1021 = vadd.f32 %v1011, %v1019
    %1022 = vrot.lane.b32.xlu0 %v249, 112
    %v1023 = vpop.permute.xlu0 %1022
    %v1025 = vmul.f32 %v862, %v1023
    %1027 = vrot.lane.b32.xlu0 %v1025, 112
    %v1028 = vpop.permute.xlu0 %1027
    %v1030 = vsel %vm359, %v1028, 0.0
    %1031 = vadd.xlane.f32.xlu0 %v1030
    %v1032 = vpop.xlane.xlu0 %1031
    %1033 = vrot.lane.b32.xlu0 %v943, 112
    %v1034 = vpop.permute.xlu0 %1033
    %v1036 = vsel %vm359, %v1034, 0.0
    %1037 = vadd.xlane.f32.xlu0 %v1036
    %v1038 = vpop.xlane.xlu0 %1037
    %1039 = vrot.lane.b32.xlu0 %v865, 112
    %v1040 = vpop.permute.xlu0 %1039
    %v1042 = vsel %vm359, %v1040, 0.0
    %1043 = vadd.xlane.f32.xlu0 %v1042
    %v1044 = vpop.xlane.xlu0 %1043
    %1045 = vrot.lane.b32.xlu0 %v872, 112
    %v1046 = vpop.permute.xlu0 %1045
    %v1048 = vsel %vm359, %v1046, 0.0
    %1049 = vadd.xlane.f32.xlu0 %v1048
    %v1050 = vpop.xlane.xlu0 %1049
    %v1051 = vsel %vm385, %v1032, %v1038
    %v1052 = vsel %vm387, %v1051, %v1044
    %v1053 = vsel %vm389, %v1052, %v1050
    %v1054 = vsel %vm391, %v1053, -inf
    %1055 = vmax.xlane.f32.xlu0 %v1054
    %v1056 = vpop.xlane.xlu0 %1055
    %v1057 = vsub.f32 %v1053, %v1056
    %v1058 = vmul.f32 %v1057, 1.442695
    %v1059 = vpow.pop %v1058
    %v1060 = vsel %vm391, %v1059, 0.0
    %1061 = vadd.xlane.f32.xlu0 %v1060
    %v1062 = vpop.xlane.xlu0 %1061
    %v1063 = vrcp.pop %v1062
    %v1064 = vmul.f32 %v1059, %v1063
    %1066 = vset.pattern.permute.xlu0 0
    %1067 = vperm.xlu0 %1066, %v1064
    %v1068 = vpop.permute.xlu0 %1067
    %v1070 = vmul.f32 %v1068, %v249
    %1071 = vset.pattern.permute.xlu0 1
    %1072 = vperm.xlu0 %1071, %v1064
    %v1073 = vpop.permute.xlu0 %1072
    %v1075 = vmul.f32 %v1073, %v249
    %1077 = vrot.lane.b32.xlu0 %v1075, 120
    %v1078 = vpop.permute.xlu0 %1077
    %v1080 = vadd.f32 %v1070, %v1078
    %1081 = vset.pattern.permute.xlu0 2
    %1082 = vperm.xlu0 %1081, %v1064
    %v1083 = vpop.permute.xlu0 %1082
    %v1085 = vmul.f32 %v1083, %v249
    %1087 = vrot.lane.b32.xlu0 %v1085, 112
    %v1088 = vpop.permute.xlu0 %1087
    %v1090 = vadd.f32 %v1080, %v1088
    %1091 = vset.pattern.permute.xlu0 3
    %1092 = vperm.xlu0 %1091, %v1064
    %v1093 = vpop.permute.xlu0 %1092
    %v1095 = vmul.f32 %v1093, %v249
    %1097 = vrot.lane.b32.xlu0 %v1095, 104
    %v1098 = vpop.permute.xlu0 %1097
    %v1100 = vadd.f32 %v1090, %v1098
    %1101 = vrot.lane.b32.xlu0 %v249, 120
    %v1102 = vpop.permute.xlu0 %1101
    %v1104 = vmul.f32 %v862, %v1102
    %1106 = vrot.lane.b32.xlu0 %v1104, 104
    %v1107 = vpop.permute.xlu0 %1106
    %v1109 = vsel %vm359, %v1107, 0.0
    %1110 = vadd.xlane.f32.xlu0 %v1109
    %v1111 = vpop.xlane.xlu0 %1110
    %1112 = vrot.lane.b32.xlu0 %v1025, 104
    %v1113 = vpop.permute.xlu0 %1112
    %v1115 = vsel %vm359, %v1113, 0.0
    %1116 = vadd.xlane.f32.xlu0 %v1115
    %v1117 = vpop.xlane.xlu0 %1116
    %1118 = vrot.lane.b32.xlu0 %v943, 104
    %v1119 = vpop.permute.xlu0 %1118
    %v1121 = vsel %vm359, %v1119, 0.0
    %1122 = vadd.xlane.f32.xlu0 %v1121
    %v1123 = vpop.xlane.xlu0 %1122
    %1124 = vrot.lane.b32.xlu0 %v865, 104
    %v1125 = vpop.permute.xlu0 %1124
    %v1127 = vsel %vm359, %v1125, 0.0
    %1128 = vadd.xlane.f32.xlu0 %v1127
    %v1129 = vpop.xlane.xlu0 %1128
    %v1130 = vsel %vm385, %v1111, %v1117
    %v1131 = vsel %vm387, %v1130, %v1123
    %v1132 = vsel %vm389, %v1131, %v1129
    %v1133 = vsel %vm391, %v1132, -inf
    %1134 = vmax.xlane.f32.xlu0 %v1133
    %v1135 = vpop.xlane.xlu0 %1134
    %v1136 = vsub.f32 %v1132, %v1135
    %v1137 = vmul.f32 %v1136, 1.442695
    %v1138 = vpow.pop %v1137
    %v1139 = vsel %vm391, %v1138, 0.0
    %1140 = vadd.xlane.f32.xlu0 %v1139
    %v1141 = vpop.xlane.xlu0 %1140
    %v1142 = vrcp.pop %v1141
    %v1143 = vmul.f32 %v1138, %v1142
    %1145 = vset.pattern.permute.xlu0 0
    %1146 = vperm.xlu0 %1145, %v1143
    %v1147 = vpop.permute.xlu0 %1146
    %v1149 = vmul.f32 %v1147, %v249
    %1150 = vset.pattern.permute.xlu0 1
    %1151 = vperm.xlu0 %1150, %v1143
    %v1152 = vpop.permute.xlu0 %1151
    %v1154 = vmul.f32 %v1152, %v249
    %1156 = vrot.lane.b32.xlu0 %v1154, 120
    %v1157 = vpop.permute.xlu0 %1156
    %v1159 = vadd.f32 %v1149, %v1157
    %1160 = vset.pattern.permute.xlu0 2
    %1161 = vperm.xlu0 %1160, %v1143
    %v1162 = vpop.permute.xlu0 %1161
    %v1164 = vmul.f32 %v1162, %v249
    %1166 = vrot.lane.b32.xlu0 %v1164, 112
    %v1167 = vpop.permute.xlu0 %1166
    %v1169 = vadd.f32 %v1159, %v1167
    %1170 = vset.pattern.permute.xlu0 3
    %1171 = vperm.xlu0 %1170, %v1143
    %v1172 = vpop.permute.xlu0 %1171
    %v1174 = vmul.f32 %v1172, %v249
    %1176 = vrot.lane.b32.xlu0 %v1174, 104
    %v1177 = vpop.permute.xlu0 %1176
    %v1179 = vadd.f32 %v1169, %v1177
    %1181 = vrot.lane.b32.xlu0 %v939, 64
    %v1182 = vpop.permute.xlu0 %1181
    %1185 = vrot.lane.b32.xlu0 %v1021, 72
    %v1186 = vpop.permute.xlu0 %1185
    %1189 = vrot.lane.b32.xlu0 %v1100, 80
    %v1190 = vpop.permute.xlu0 %1189
    %1193 = vrot.lane.b32.xlu0 %v1179, 88
    %v1194 = vpop.permute.xlu0 %1193
    %v1196 = vsel %vm359, %v1182, %v1186
    %v1197 = vsel %vm696, %v1196, %v1190
    %v1198 = vsel %vm698, %v1197, %v1194
    %1199 = vrot.lane.b32.xlu0 %v354, 64
    %v1200 = vpop.permute.xlu0 %1199
    %1201 = vrot.lane.b32.xlu0 %v355, 64
    %v1202 = vpop.permute.xlu0 %1201
    %1203 = vrot.lane.b32.xlu0 %v356, 64
    %v1204 = vpop.permute.xlu0 %1203
    %1205 = vrot.lane.b32.xlu0 %v357, 64
    %v1206 = vpop.permute.xlu0 %1205
    %v1212 = vsel %vm101, %v1198, 0
    %1214 = vmatprep.subr.mxu0 0.0
    %1215 = vmatpush1.msra.mxu0 %v1200
    %1216 = vmatprep.subr.mxu0 0.0
    %1217 = vmatpush1.msra.mxu0 %v1202
    %1218 = vmatprep.subr.mxu0 0.0
    %1219 = vmatpush1.msra.mxu0 %v1204
    %1220 = vmatprep.subr.mxu0 0.0
    %1221 = vmatpush1.msra.mxu0 %v1206
    %1222 = vmatprep.subr.mxu0 0.0
    %1223 = vmatpush1.msra.mxu0 0.0
    %1224 = vmatprep.subr.mxu0 0.0
    %1225 = vmatpush1.msra.mxu0 0.0
    %1226 = vmatprep.subr.mxu0 0.0
    %1227 = vmatpush1.msra.mxu0 0.0
    %1228 = vmatprep.subr.mxu0 0.0
    %1229 = vmatpush1.msra.mxu0 0.0
    %1230 = vmatprep.subr.mxu0 0.0
    %1231 = vmatpush1.msra.mxu0 0.0
    %1232 = vmatprep.subr.mxu0 0.0
    %1233 = vmatpush1.msra.mxu0 0.0
    %1234 = vmatprep.subr.mxu0 0.0
    %1235 = vmatpush1.msra.mxu0 0.0
    %1236 = vmatprep.subr.mxu0 0.0
    %1237 = vmatpush1.msra.mxu0 0.0
    %1238 = vmatprep.subr.mxu0 0.0
    %1239 = vmatpush1.msra.mxu0 0.0
    %1240 = vmatprep.subr.mxu0 0.0
    %1241 = vmatpush1.msra.mxu0 0.0
    %1242 = vmatprep.subr.mxu0 0.0
    %1243 = vmatpush1.msra.mxu0 0.0
    %1244 = vmatprep.subr.mxu0 0.0
    %1245 = vmatpush1.msra.mxu0 0.0
    %1246 = vmatprep.subr.mxu0 0.0
    %1247 = vmatpush1.msra.mxu0 0.0
    %1248 = vmatprep.subr.mxu0 0.0
    %1249 = vmatpush1.msra.mxu0 0.0
    %1250 = vmatprep.subr.mxu0 0.0
    %1251 = vmatpush1.msra.mxu0 0.0
    %1252 = vmatprep.subr.mxu0 0.0
    %1253 = vmatpush1.msra.mxu0 0.0
    %1254 = vmatprep.subr.mxu0 0.0
    %1255 = vmatpush1.msra.mxu0 0.0
    %1256 = vmatprep.subr.mxu0 0.0
    %1257 = vmatpush1.msra.mxu0 0.0
    %1258 = vmatprep.subr.mxu0 0.0
    %1259 = vmatpush1.msra.mxu0 0.0
    %1260 = vmatprep.subr.mxu0 0.0
    %1261 = vmatpush1.msra.mxu0 0.0
    %1262 = vmatprep.subr.mxu0 0.0
    %1263 = vmatpush1.msra.mxu0 0.0
    %1264 = vmatprep.subr.mxu0 0.0
    %1265 = vmatpush1.msra.mxu0 0.0
    %1266 = vmatprep.subr.mxu0 0.0
    %1267 = vmatpush1.msra.mxu0 0.0
    %1268 = vmatprep.subr.mxu0 0.0
    %1269 = vmatpush1.msra.mxu0 0.0
    %1270 = vmatprep.subr.mxu0 0.0
    %1271 = vmatpush1.msra.mxu0 0.0
    %1272 = vmatprep.subr.mxu0 0.0
    %1273 = vmatpush1.msra.mxu0 0.0
    %1274 = vmatprep.subr.mxu0 0.0
    %1275 = vmatpush1.msra.mxu0 0.0
    %1276 = vmatprep.subr.mxu0 0.0
    %1277 = vmatpush1.msra.mxu0 0.0
    %1278 = vmatprep.mubr.f32.mxu0 0.0
    %1279 = vmatmul.mubr.f32.gmra.mrb[0].mxu0 %v1212
    %v1280 = vpop.f32.mrb[0].mxu0
    %v1281 = vadd.f32 %v264, %v1280
    %v1282 = vpop.f32.mrb[0].mxu0
    %1283 = vdwg.mxu0
    %1284 = vrot.lane.b32.xlu0 %v96, 32
    %v1285 = vpop.permute.xlu0 %1284
    %1287 = vrot.lane.b32.xlu0 %v773, 64
    %v1288 = vpop.permute.xlu0 %1287
    %1291 = vrot.lane.b32.xlu0 %v1281, 96
    %v1292 = vpop.permute.xlu0 %1291
    %v1294 = vsel %vm101, %v95, %v1285
    %vm1295 = vcmask 523264
    %v1296 = vsel %vm1295, %v1294, %v1288
    %vm1297 = vcmask 785408
    %v1298 = vsel %vm1297, %v1296, %v1292
    %1299 = vst [vmem:[%s8] sm:$0xff] %v1298
    %1300 = vst [vmem:[%s8 + $0x8] sm:$0xff] %v351
    // Predicated region
    $region54: #{pred_model_fused.1} parent=1 // pred_check
      _
    $region55: #{pred_model_fused.1} parent=1 // pred_check_branch
      %1302 = sbr.rel (0) target = $region57
    $region56: #{pred_model_fused.1} parent=1 // pred_region
      _
    $region57: #{pred_model_fused.1} parent=1 // pred_fallthru
      _
    // Predicated region
    $region58: #{pred_model_fused.1} parent=1 // pred_check
      _
    $region59: #{pred_model_fused.1} parent=1 // pred_check_branch
      %1304 = sbr.rel (0) target = $region61
    $region60: #{pred_model_fused.1} parent=1 // pred_region
      _
    $region61: #{pred_model_fused.1} parent=1 // pred_fallthru
      _
    %1305 = vsyncpa [#allocation3], 1
    %1306 = vsyncpa [#allocation5], 1
    %1307 = vsyncpa [#allocation8], 1

</llo_original>
